<compile_context>
chip_gen: v7x
topology: tpu7x:2x2x1
jax: 0.10.0
libtpu: 0.0.40
codegen_flags: <defaults>
</compile_context>

<pallas_src>
import functools

import jax
import jax.numpy as jnp
from jax.experimental import pallas as pl
from jax.experimental.pallas import tpu as pltpu

BN_EPS = 1e-5
LEAKY_SLOPE = 0.01
LANE = 128
SUB_BF16 = 16  # bf16 sublane packing: keep row offsets 16-aligned in the slab


def _round_up(n, m):
    return ((n + m - 1) // m) * m


def _make_mlp_kernel(geom, batch):
    """geom: static tuple of (row_offset, d_in_pad, d_out_pad) per layer."""
    inv_n = 1.0 / float(batch)

    def kernel(x_ref, w_ref, gb_ref, o_ref):
        gb = gb_ref[...]                        # (2L, DMAX) f32, tiny
        h = x_ref[...]                          # (B, d_in0) f32
        # One reduction operand shared by every (unrolled) layer. M=8 keeps
        # the MXU matvec on a comfortably supported shape; the 7 redundant
        # rows are free on an otherwise idle MXU.
        ones8 = jnp.ones((8, batch), jnp.float32)

        for i, (row0, d_in, d_out) in enumerate(geom):
            # Static, tile-aligned view into the packed bf16 weight slab
            # (row offsets are multiples of 16, columns start at 0).
            w = w_ref[row0:row0 + d_in, :d_out].astype(jnp.float32)

            # Linear on the MXU, f32 accumulate. Bias omitted: a per-feature
            # constant is exactly removed by the batch-mean subtraction below.
            y = jnp.dot(h, w, preferred_element_type=jnp.float32)   # (B, d_out)

            # BatchNorm1d, training-mode batch statistics (biased variance),
            # single pass: both sums come from ONE MXU matvec over [y | y*y].
            cat = jnp.concatenate([y, y * y], axis=1)               # (B, 2*d_out)
            sums = jnp.dot(ones8, cat,
                           preferred_element_type=jnp.float32)      # (8, 2*d_out)
            mean = sums[0:1, :d_out] * inv_n                        # (1, d_out)
            ex2 = sums[0:1, d_out:] * inv_n
            var = ex2 - mean * mean
            inv_std = jax.lax.rsqrt(var + BN_EPS)                   # EUP

            gamma = gb[2 * i:2 * i + 1, :d_out]                     # (1, d_out)
            beta = gb[2 * i + 1:2 * i + 2, :d_out]
            scale = gamma * inv_std
            shift = beta - scale * mean
            z = scale * y + shift

            # LeakyReLU(0.01) == max(z, 0.01*z) for a slope in (0, 1).
            h = jnp.maximum(z, LEAKY_SLOPE * z)

        o_ref[...] = h                          # (B, d_out_final_pad)

    return kernel


def prepare_packed_params(params):
    """Pack every layer's weight into ONE sublane-stacked bf16 slab.

    Each weight is pre-transposed to (d_in, d_out), zero-padded to
    (d_in_pad, d_out_pad) and written at a 16-aligned row offset; the lane
    width is max(d_out_pad). gamma/beta of all layers go into one
    (2L, DMAX) f32 array (padded entries 0, so padded lanes stay exactly 0
    inside the kernel). Returns (w_packed_bf16, gb_f32, geom) with geom a
    static tuple of (row_offset, d_in_pad, d_out_pad) per layer.
    """
    geom = []
    row = 0
    dmax = 0
    prev_out_pad = None
    for li, (w, _b, _g, _be) in enumerate(params):
        d_out, d_in = w.shape
        d_in_pad = _round_up(d_in, SUB_BF16) if li == 0 else prev_out_pad
        d_out_pad = _round_up(d_out, LANE)
        geom.append((row, d_in_pad, d_out_pad))
        dmax = max(dmax, d_out_pad)
        prev_out_pad = d_out_pad
        row += d_in_pad
    total_rows = _round_up(row, SUB_BF16)

    w_packed = jnp.zeros((total_rows, dmax), jnp.bfloat16)
    for (row0, _dip, _dop), (w, _b, _g, _be) in zip(geom, params):
        d_out, d_in = w.shape
        w_packed = w_packed.at[row0:row0 + d_in, :d_out].set(
            w.T.astype(jnp.bfloat16))

    gb = jnp.zeros((2 * len(params), dmax), jnp.float32)
    for i, (w, _b, gamma, beta) in enumerate(params):
        d_out = w.shape[0]
        gb = gb.at[2 * i, :d_out].set(gamma)
        gb = gb.at[2 * i + 1, :d_out].set(beta)
    return w_packed, gb, tuple(geom)


@functools.partial(jax.jit, static_argnames=("geom", "out_dim"))
def neural_net_forward(x, w_packed, gb, geom, out_dim):
    """Whole NeuralNet forward in a single Pallas call."""
    batch = x.shape[0]
    d_in0 = geom[0][1]
    d_out_final_pad = geom[-1][2]

    # Only pad the input if the first fan-in is not already 16-aligned
    # (a no-op for the default input_size=32).
    if x.shape[1] != d_in0:
        x = jnp.zeros((batch, d_in0), x.dtype).at[:, :x.shape[1]].set(x)

    flops = 2 * batch * sum(d_in * d_out for (_r, d_in, d_out) in geom)
    transcendentals = sum(d_out for (_r, _di, d_out) in geom)
    bytes_accessed = (x.shape[0] * x.shape[1] * 4 + w_packed.size * 2
                      + gb.size * 4 + batch * d_out_final_pad * 4)

    out_pad = pl.pallas_call(
        _make_mlp_kernel(geom, batch),
        out_shape=jax.ShapeDtypeStruct((batch, d_out_final_pad), jnp.float32),
        in_specs=[pl.BlockSpec(memory_space=pltpu.MemorySpace.VMEM)] * 3,
        out_specs=pl.BlockSpec(memory_space=pltpu.MemorySpace.VMEM),
        # Footprint is <1 MiB; keep the limit at/below the v7x scoped default
        # (32 MiB) so nothing inherited breaks on 64-MiB-VMEM parts.
        compiler_params=pltpu.CompilerParams(vmem_limit_bytes=32 * 1024 * 1024),
        cost_estimate=pl.CostEstimate(flops=flops,
                                      transcendentals=transcendentals,
                                      bytes_accessed=bytes_accessed),
    )(x, w_packed, gb)

    # Narrow slice to the real output width happens once, outside the kernel,
    # so the kernel's only HBM write is a lane-dense (B, 128) slab.
    return out_pad[:, :out_dim]


def init_params(key, input_size, output_size, layer_sizes):
    """PyTorch-default-style init: Linear U(-1/sqrt(fan_in), 1/sqrt(fan_in))
    for weight and bias; BatchNorm1d gamma=1, beta=0."""
    sizes = [input_size] + list(layer_sizes) + [output_size]
    params = []
    for d_in, d_out in zip(sizes[:-1], sizes[1:]):
        key, kw, kb = jax.random.split(key, 3)
        bound = 1.0 / jnp.sqrt(jnp.float32(d_in))
        w = jax.random.uniform(kw, (d_out, d_in), jnp.float32, -bound, bound)
        b = jax.random.uniform(kb, (d_out,), jnp.float32, -bound, bound)
        gamma = jnp.ones((d_out,), jnp.float32)
        beta = jnp.zeros((d_out,), jnp.float32)
        params.append((w, b, gamma, beta))
    return params


def reference_forward(x, params, weight_dtype=jnp.float32):
    """Pure-JAX reference with the original PyTorch semantics (incl. bias).
    weight_dtype=bfloat16 reproduces the kernel's weight quantization."""
    for (w, b, gamma, beta) in params:
        wq = w.astype(weight_dtype).astype(jnp.float32)
        y = x @ wq.T + b
        mean = y.mean(axis=0, keepdims=True)
        var = ((y - mean) ** 2).mean(axis=0, keepdims=True)
        z = gamma * (y - mean) / jnp.sqrt(var + BN_EPS) + beta
        x = jnp.where(z >= 0, z, LEAKY_SLOPE * z)
    return x


if __name__ == "__main__":
    # Module defaults: layer_sizes=[300, 150, 50], LeakyReLU, batch_norm=True.
    input_size = 32
    output_size = 10
    layer_sizes = [300, 150, 50]
    batch = 16  # multiple of 8 (sublane tile) for a clean in-block BN reduce

    key = jax.random.PRNGKey(0)
    key, kx = jax.random.split(key)
    x = jax.random.normal(kx, (batch, input_size), jnp.float32)

    params = init_params(key, input_size, output_size, layer_sizes)
    params = tuple(tuple(p) for p in params)

    w_packed, gb, geom = prepare_packed_params(params)

    out = neural_net_forward(x, w_packed, gb, geom, output_size)
    out = jax.block_until_ready(out)
    assert out.shape == (batch, output_size), out.shape

    # Tight check vs a reference using the SAME bf16-rounded weights:
    # bias-drop under batch-stat BN and the single-pass variance are exact,
    # so only fp-reassociation differences remain.
    ref_q = reference_forward(x, params, weight_dtype=jnp.bfloat16)
    assert jnp.allclose(out, ref_q, atol=2e-4, rtol=2e-3), (
        float(jnp.max(jnp.abs(out - ref_q))))

    # Loose sanity check vs the exact f32 reference; the only gap is the bf16
    # weight quantization, which BN's per-column re-normalization keeps small.
    ref = reference_forward(x, params, weight_dtype=jnp.float32)
    assert jnp.allclose(out, ref, atol=5e-2, rtol=5e-2), (
        float(jnp.max(jnp.abs(out - ref))))

    # TODO(synk): nn.BatchNorm1d running_mean/running_var updates are not
    # modeled (forward-only, training-mode batch statistics).
    print("KERNEL_OK")
</pallas_src>

<mosaic_0001>
module attributes {stable_mosaic.version = 11 : i64} {
  func.func @kernel(%arg0: memref<16x32xf32, #tpu.memory_space<vmem>>, %arg1: memref<800x384xbf16, #tpu.memory_space<vmem>>, %arg2: memref<8x384xf32, #tpu.memory_space<vmem>>, %arg3: memref<16x128xf32, #tpu.memory_space<vmem>>) attributes {dimension_semantics = [], scalar_prefetch = 0 : i64, scratch_operands = 0 : i64, tpu.core_type = #tpu.core_type<tc>} {
    %c0 = arith.constant 0 : index
    %c0_0 = arith.constant 0 : index
    %0 = vector.load %arg2[%c0, %c0_0] : memref<8x384xf32, #tpu.memory_space<vmem>>, vector<8x384xf32>
    %c0_1 = arith.constant 0 : index
    %c0_2 = arith.constant 0 : index
    %1 = vector.load %arg0[%c0_1, %c0_2] : memref<16x32xf32, #tpu.memory_space<vmem>>, vector<16x32xf32>
    %cst = arith.constant 1.000000e+00 : f32
    %2 = vector.broadcast %cst : f32 to vector<8x16xf32>
    %c0_3 = arith.constant 0 : index
    %c0_4 = arith.constant 0 : index
    %3 = vector.load %arg1[%c0_3, %c0_4] : memref<800x384xbf16, #tpu.memory_space<vmem>>, vector<32x384xbf16>
    %4 = arith.extf %3 : vector<32x384xbf16> to vector<32x384xf32>
    %cst_5 = arith.constant dense<0.000000e+00> : vector<16x384xf32>
    %5 = tpu.matmul %1, %4, %cst_5 {dimension_numbers = #tpu.dot_dimension_numbers<[1], [0], [0], [1], [0, 0, 1, 1], [], []>} : vector<16x32xf32>, vector<32x384xf32>, vector<16x384xf32> -> vector<16x384xf32>
    %6 = arith.mulf %5, %5 : vector<16x384xf32>
    %7 = tpu.concatenate %5, %6 in 1 : vector<16x384xf32>, vector<16x384xf32> -> vector<16x768xf32>
    %cst_6 = arith.constant dense<0.000000e+00> : vector<8x768xf32>
    %8 = tpu.matmul %2, %7, %cst_6 {dimension_numbers = #tpu.dot_dimension_numbers<[1], [0], [0], [1], [0, 0, 1, 1], [], []>} : vector<8x16xf32>, vector<16x768xf32>, vector<8x768xf32> -> vector<8x768xf32>
    %9 = vector.extract_strided_slice %8 {offsets = [0, 0], sizes = [1, 384], strides = [1, 1]} : vector<8x768xf32> to vector<1x384xf32>
    %cst_7 = arith.constant 6.250000e-02 : f32
    %10 = vector.broadcast %cst_7 : f32 to vector<1x384xf32>
    %11 = arith.mulf %9, %10 : vector<1x384xf32>
    %12 = vector.extract_strided_slice %8 {offsets = [0, 384], sizes = [1, 384], strides = [1, 1]} : vector<8x768xf32> to vector<1x384xf32>
    %cst_8 = arith.constant 6.250000e-02 : f32
    %13 = vector.broadcast %cst_8 : f32 to vector<1x384xf32>
    %14 = arith.mulf %12, %13 : vector<1x384xf32>
    %15 = arith.mulf %11, %11 : vector<1x384xf32>
    %16 = arith.subf %14, %15 : vector<1x384xf32>
    %cst_9 = arith.constant 9.99999974E-6 : f32
    %17 = vector.broadcast %cst_9 : f32 to vector<1x384xf32>
    %18 = arith.addf %16, %17 : vector<1x384xf32>
    %19 = math.rsqrt %18 : vector<1x384xf32>
    %20 = vector.extract_strided_slice %0 {offsets = [0, 0], sizes = [1, 384], strides = [1, 1]} : vector<8x384xf32> to vector<1x384xf32>
    %21 = vector.extract_strided_slice %0 {offsets = [1, 0], sizes = [1, 384], strides = [1, 1]} : vector<8x384xf32> to vector<1x384xf32>
    %22 = arith.mulf %20, %19 : vector<1x384xf32>
    %23 = arith.mulf %22, %11 : vector<1x384xf32>
    %24 = arith.subf %21, %23 : vector<1x384xf32>
    %25 = vector.broadcast %22 : vector<1x384xf32> to vector<16x384xf32>
    %26 = arith.mulf %25, %5 : vector<16x384xf32>
    %27 = vector.broadcast %24 : vector<1x384xf32> to vector<16x384xf32>
    %28 = arith.addf %26, %27 : vector<16x384xf32>
    %cst_10 = arith.constant 0.00999999977 : f32
    %29 = vector.broadcast %cst_10 : f32 to vector<16x384xf32>
    %30 = arith.mulf %29, %28 : vector<16x384xf32>
    %31 = arith.maximumf %28, %30 : vector<16x384xf32>
    %c32 = arith.constant 32 : index
    %c0_11 = arith.constant 0 : index
    %32 = vector.load %arg1[%c32, %c0_11] : memref<800x384xbf16, #tpu.memory_space<vmem>>, vector<384x256xbf16>
    %33 = arith.extf %32 : vector<384x256xbf16> to vector<384x256xf32>
    %cst_12 = arith.constant dense<0.000000e+00> : vector<16x256xf32>
    %34 = tpu.matmul %31, %33, %cst_12 {dimension_numbers = #tpu.dot_dimension_numbers<[1], [0], [0], [1], [0, 0, 1, 1], [], []>} : vector<16x384xf32>, vector<384x256xf32>, vector<16x256xf32> -> vector<16x256xf32>
    %35 = arith.mulf %34, %34 : vector<16x256xf32>
    %36 = tpu.concatenate %34, %35 in 1 : vector<16x256xf32>, vector<16x256xf32> -> vector<16x512xf32>
    %cst_13 = arith.constant dense<0.000000e+00> : vector<8x512xf32>
    %37 = tpu.matmul %2, %36, %cst_13 {dimension_numbers = #tpu.dot_dimension_numbers<[1], [0], [0], [1], [0, 0, 1, 1], [], []>} : vector<8x16xf32>, vector<16x512xf32>, vector<8x512xf32> -> vector<8x512xf32>
    %38 = vector.extract_strided_slice %37 {offsets = [0, 0], sizes = [1, 256], strides = [1, 1]} : vector<8x512xf32> to vector<1x256xf32>
    %cst_14 = arith.constant 6.250000e-02 : f32
    %39 = vector.broadcast %cst_14 : f32 to vector<1x256xf32>
    %40 = arith.mulf %38, %39 : vector<1x256xf32>
    %41 = vector.extract_strided_slice %37 {offsets = [0, 256], sizes = [1, 256], strides = [1, 1]} : vector<8x512xf32> to vector<1x256xf32>
    %cst_15 = arith.constant 6.250000e-02 : f32
    %42 = vector.broadcast %cst_15 : f32 to vector<1x256xf32>
    %43 = arith.mulf %41, %42 : vector<1x256xf32>
    %44 = arith.mulf %40, %40 : vector<1x256xf32>
    %45 = arith.subf %43, %44 : vector<1x256xf32>
    %cst_16 = arith.constant 9.99999974E-6 : f32
    %46 = vector.broadcast %cst_16 : f32 to vector<1x256xf32>
    %47 = arith.addf %45, %46 : vector<1x256xf32>
    %48 = math.rsqrt %47 : vector<1x256xf32>
    %49 = vector.extract_strided_slice %0 {offsets = [2, 0], sizes = [1, 256], strides = [1, 1]} : vector<8x384xf32> to vector<1x256xf32>
    %50 = vector.extract_strided_slice %0 {offsets = [3, 0], sizes = [1, 256], strides = [1, 1]} : vector<8x384xf32> to vector<1x256xf32>
    %51 = arith.mulf %49, %48 : vector<1x256xf32>
    %52 = arith.mulf %51, %40 : vector<1x256xf32>
    %53 = arith.subf %50, %52 : vector<1x256xf32>
    %54 = vector.broadcast %51 : vector<1x256xf32> to vector<16x256xf32>
    %55 = arith.mulf %54, %34 : vector<16x256xf32>
    %56 = vector.broadcast %53 : vector<1x256xf32> to vector<16x256xf32>
    %57 = arith.addf %55, %56 : vector<16x256xf32>
    %cst_17 = arith.constant 0.00999999977 : f32
    %58 = vector.broadcast %cst_17 : f32 to vector<16x256xf32>
    %59 = arith.mulf %58, %57 : vector<16x256xf32>
    %60 = arith.maximumf %57, %59 : vector<16x256xf32>
    %c416 = arith.constant 416 : index
    %c0_18 = arith.constant 0 : index
    %61 = vector.load %arg1[%c416, %c0_18] : memref<800x384xbf16, #tpu.memory_space<vmem>>, vector<256x128xbf16>
    %62 = arith.extf %61 : vector<256x128xbf16> to vector<256x128xf32>
    %cst_19 = arith.constant dense<0.000000e+00> : vector<16x128xf32>
    %63 = tpu.matmul %60, %62, %cst_19 {dimension_numbers = #tpu.dot_dimension_numbers<[1], [0], [0], [1], [0, 0, 1, 1], [], []>} : vector<16x256xf32>, vector<256x128xf32>, vector<16x128xf32> -> vector<16x128xf32>
    %64 = arith.mulf %63, %63 : vector<16x128xf32>
    %65 = tpu.concatenate %63, %64 in 1 : vector<16x128xf32>, vector<16x128xf32> -> vector<16x256xf32>
    %cst_20 = arith.constant dense<0.000000e+00> : vector<8x256xf32>
    %66 = tpu.matmul %2, %65, %cst_20 {dimension_numbers = #tpu.dot_dimension_numbers<[1], [0], [0], [1], [0, 0, 1, 1], [], []>} : vector<8x16xf32>, vector<16x256xf32>, vector<8x256xf32> -> vector<8x256xf32>
    %67 = vector.extract_strided_slice %66 {offsets = [0, 0], sizes = [1, 128], strides = [1, 1]} : vector<8x256xf32> to vector<1x128xf32>
    %cst_21 = arith.constant 6.250000e-02 : f32
    %68 = vector.broadcast %cst_21 : f32 to vector<1x128xf32>
    %69 = arith.mulf %67, %68 : vector<1x128xf32>
    %70 = vector.extract_strided_slice %66 {offsets = [0, 128], sizes = [1, 128], strides = [1, 1]} : vector<8x256xf32> to vector<1x128xf32>
    %cst_22 = arith.constant 6.250000e-02 : f32
    %71 = vector.broadcast %cst_22 : f32 to vector<1x128xf32>
    %72 = arith.mulf %70, %71 : vector<1x128xf32>
    %73 = arith.mulf %69, %69 : vector<1x128xf32>
    %74 = arith.subf %72, %73 : vector<1x128xf32>
    %cst_23 = arith.constant 9.99999974E-6 : f32
    %75 = vector.broadcast %cst_23 : f32 to vector<1x128xf32>
    %76 = arith.addf %74, %75 : vector<1x128xf32>
    %77 = math.rsqrt %76 : vector<1x128xf32>
    %78 = vector.extract_strided_slice %0 {offsets = [4, 0], sizes = [1, 128], strides = [1, 1]} : vector<8x384xf32> to vector<1x128xf32>
    %79 = vector.extract_strided_slice %0 {offsets = [5, 0], sizes = [1, 128], strides = [1, 1]} : vector<8x384xf32> to vector<1x128xf32>
    %80 = arith.mulf %78, %77 : vector<1x128xf32>
    %81 = arith.mulf %80, %69 : vector<1x128xf32>
    %82 = arith.subf %79, %81 : vector<1x128xf32>
    %83 = vector.broadcast %80 : vector<1x128xf32> to vector<16x128xf32>
    %84 = arith.mulf %83, %63 : vector<16x128xf32>
    %85 = vector.broadcast %82 : vector<1x128xf32> to vector<16x128xf32>
    %86 = arith.addf %84, %85 : vector<16x128xf32>
    %cst_24 = arith.constant 0.00999999977 : f32
    %87 = vector.broadcast %cst_24 : f32 to vector<16x128xf32>
    %88 = arith.mulf %87, %86 : vector<16x128xf32>
    %89 = arith.maximumf %86, %88 : vector<16x128xf32>
    %c672 = arith.constant 672 : index
    %c0_25 = arith.constant 0 : index
    %90 = vector.load %arg1[%c672, %c0_25] : memref<800x384xbf16, #tpu.memory_space<vmem>>, vector<128x128xbf16>
    %91 = arith.extf %90 : vector<128x128xbf16> to vector<128x128xf32>
    %cst_26 = arith.constant dense<0.000000e+00> : vector<16x128xf32>
    %92 = tpu.matmul %89, %91, %cst_26 {dimension_numbers = #tpu.dot_dimension_numbers<[1], [0], [0], [1], [0, 0, 1, 1], [], []>} : vector<16x128xf32>, vector<128x128xf32>, vector<16x128xf32> -> vector<16x128xf32>
    %93 = arith.mulf %92, %92 : vector<16x128xf32>
    %94 = tpu.concatenate %92, %93 in 1 : vector<16x128xf32>, vector<16x128xf32> -> vector<16x256xf32>
    %cst_27 = arith.constant dense<0.000000e+00> : vector<8x256xf32>
    %95 = tpu.matmul %2, %94, %cst_27 {dimension_numbers = #tpu.dot_dimension_numbers<[1], [0], [0], [1], [0, 0, 1, 1], [], []>} : vector<8x16xf32>, vector<16x256xf32>, vector<8x256xf32> -> vector<8x256xf32>
    %96 = vector.extract_strided_slice %95 {offsets = [0, 0], sizes = [1, 128], strides = [1, 1]} : vector<8x256xf32> to vector<1x128xf32>
    %cst_28 = arith.constant 6.250000e-02 : f32
    %97 = vector.broadcast %cst_28 : f32 to vector<1x128xf32>
    %98 = arith.mulf %96, %97 : vector<1x128xf32>
    %99 = vector.extract_strided_slice %95 {offsets = [0, 128], sizes = [1, 128], strides = [1, 1]} : vector<8x256xf32> to vector<1x128xf32>
    %cst_29 = arith.constant 6.250000e-02 : f32
    %100 = vector.broadcast %cst_29 : f32 to vector<1x128xf32>
    %101 = arith.mulf %99, %100 : vector<1x128xf32>
    %102 = arith.mulf %98, %98 : vector<1x128xf32>
    %103 = arith.subf %101, %102 : vector<1x128xf32>
    %cst_30 = arith.constant 9.99999974E-6 : f32
    %104 = vector.broadcast %cst_30 : f32 to vector<1x128xf32>
    %105 = arith.addf %103, %104 : vector<1x128xf32>
    %106 = math.rsqrt %105 : vector<1x128xf32>
    %107 = vector.extract_strided_slice %0 {offsets = [6, 0], sizes = [1, 128], strides = [1, 1]} : vector<8x384xf32> to vector<1x128xf32>
    %108 = vector.extract_strided_slice %0 {offsets = [7, 0], sizes = [1, 128], strides = [1, 1]} : vector<8x384xf32> to vector<1x128xf32>
    %109 = arith.mulf %107, %106 : vector<1x128xf32>
    %110 = arith.mulf %109, %98 : vector<1x128xf32>
    %111 = arith.subf %108, %110 : vector<1x128xf32>
    %112 = vector.broadcast %109 : vector<1x128xf32> to vector<16x128xf32>
    %113 = arith.mulf %112, %92 : vector<16x128xf32>
    %114 = vector.broadcast %111 : vector<1x128xf32> to vector<16x128xf32>
    %115 = arith.addf %113, %114 : vector<16x128xf32>
    %cst_31 = arith.constant 0.00999999977 : f32
    %116 = vector.broadcast %cst_31 : f32 to vector<16x128xf32>
    %117 = arith.mulf %116, %115 : vector<16x128xf32>
    %118 = arith.maximumf %115, %117 : vector<16x128xf32>
    %c0_32 = arith.constant 0 : index
    %c0_33 = arith.constant 0 : index
    %119 = vector.load %arg3[%c0_32, %c0_33] : memref<16x128xf32, #tpu.memory_space<vmem>>, vector<16x128xf32>
    tpu.vector_store %arg3[%c0_32, %c0_33], %118 {strides = array<i32>} : memref<16x128xf32, #tpu.memory_space<vmem>>, vector<16x128xf32>,
    return
  }
}

</mosaic_0001>

<llo_original>
// kernel: neural_net_forward.1
$region0: #{neural_net_forward.1}
  #allocation0 [shape = 'u32[]', space=smem, size = 0x4, offset = 0x4, fixed_abs, tag = 'smem constant byte address 0x4 - core index']
  #allocation1 [shape = 'u32[144,128]{1,0:T(1,128)}', space=vmem, size = 0x12000, scoped, tag = 'internal scratch']
  %s0 = inlined_call_operand.hbm [shape: f32[16,32], index: 0, kind: input, shape index: {}]
  %s1 = inlined_call_operand.hbm [shape: bf16[800,384], index: 1, kind: input, shape index: {}]
  %s2 = inlined_call_operand.hbm [shape: f32[8,384], index: 2, kind: input, shape index: {}]
  %s3 = inlined_call_operand.hbm [shape: f32[16,128], index: 3, kind: output, shape index: {}]
  %s4 = sld [smem:[#allocation0]]
  $region34: #{neural_net_forward.1} parent=0
    _
  %s6 = ssub.s32 1, %s4
  %s7 = scalar_select 0, %s6, %s4
  $region1: #{neural_net_forward.1} parent=0
    #allocation2 [shape = 'u8[8192]{0}', space=vmem, size = 0x2000, scoped, tag = 'input window, operand 0, single buffered']
    #allocation3 [shape = 's32[1]{0}', space=sflag, size = 0x4, scoped, tag = 'scoped memory for neural_net_forward.1']
    #allocation4 [shape = 's32[1]{0}', space=sflag, size = 0x4, scoped, tag = 'scoped memory for neural_net_forward.1']
    #allocation5 [shape = 'u8[614400]{0}', space=vmem, size = 0x96000, scoped, tag = 'input window, operand 1, single buffered']
    #allocation6 [shape = 's32[1]{0}', space=sflag, size = 0x4, scoped, tag = 'scoped memory for neural_net_forward.1']
    #allocation7 [shape = 'u8[12288]{0}', space=vmem, size = 0x3000, scoped, tag = 'input window, operand 2, single buffered']
    #allocation8 [shape = 'u8[8192]{0}', space=vmem, size = 0x2000, scoped, tag = 'output window, operand 0, single buffered']
    %8 = vsyncpa [#allocation3], 0
    %9 = vsyncpa [#allocation6], 0
    %10 = vsyncpa [#allocation4], 0
    // Predicated region
    $region2: #{neural_net_forward.1} parent=1 // pred_check
      _
    $region3: #{neural_net_forward.1} parent=1 // pred_check_branch
      %12 = sbr.rel (0) target = $region5
    $region4: #{neural_net_forward.1} parent=1 // pred_region
      %s14 = ssub.s32 256, 256
      %15 = vsyncadd [#allocation3], %s14
      %s16 = sshll.u32 [#allocation2], 4
      %s17 = int_to_ptr.vmem [resolvable:$true] %s16
      %22 = dma.hbm_to_vmem [thread:$0]  %s0, 256, %s17, [#allocation3], 128, 128, 8
    $region5: #{neural_net_forward.1} parent=1 // pred_fallthru
      _
    // Predicated region
    $region6: #{neural_net_forward.1} parent=1 // pred_check
      _
    $region7: #{neural_net_forward.1} parent=1 // pred_check_branch
      %24 = sbr.rel (0) target = $region9
    $region8: #{neural_net_forward.1} parent=1 // pred_region
      %s26 = ssub.s32 19200, 19200
      %27 = vsyncadd [#allocation6], %s26
      %s28 = sshll.u32 [#allocation5], 4
      %s29 = int_to_ptr.vmem [resolvable:$true] %s28
      %34 = dma.hbm_to_vmem [thread:$0]  %s1, 19200, %s29, [#allocation6], 192, 192, 12
    $region9: #{neural_net_forward.1} parent=1 // pred_fallthru
      _
    // Predicated region
    $region10: #{neural_net_forward.1} parent=1 // pred_check
      _
    $region11: #{neural_net_forward.1} parent=1 // pred_check_branch
      %36 = sbr.rel (0) target = $region13
    $region12: #{neural_net_forward.1} parent=1 // pred_region
      %s38 = ssub.s32 384, 384
      %39 = vsyncadd [#allocation6], %s38
      %s41 = sshll.u32 [#allocation7], 4
      %s42 = int_to_ptr.vmem [resolvable:$true] %s41
      %44 = dma.hbm_to_vmem [thread:$0]  %s2, 384, %s42, [#allocation6]
    $region13: #{neural_net_forward.1} parent=1 // pred_fallthru
      _
    // Predicated region
    $region14: #{neural_net_forward.1} parent=1 // pred_check
      _
    $region15: #{neural_net_forward.1} parent=1 // pred_check_branch
      %46 = sbr.rel (0) target = $region17
    $region16: #{neural_net_forward.1} parent=1 // pred_region
      %47 = dma.done [#allocation3], 256
    $region17: #{neural_net_forward.1} parent=1 // pred_fallthru
      _
    // Predicated region
    $region18: #{neural_net_forward.1} parent=1 // pred_check
      _
    $region19: #{neural_net_forward.1} parent=1 // pred_check_branch
      %49 = sbr.rel (0) target = $region21
    $region20: #{neural_net_forward.1} parent=1 // pred_region
      %50 = dma.done [#allocation6], 19200
    $region21: #{neural_net_forward.1} parent=1 // pred_fallthru
      _
    // Predicated region
    $region22: #{neural_net_forward.1} parent=1 // pred_check
      _
    $region23: #{neural_net_forward.1} parent=1 // pred_check_branch
      %52 = sbr.rel (0) target = $region25
    $region24: #{neural_net_forward.1} parent=1 // pred_region
      %53 = dma.done [#allocation6], 384
    $region25: #{neural_net_forward.1} parent=1 // pred_fallthru
      _
    %v54 = vld [vmem:[#allocation7] sm:$0xff]
    %v55 = vld [vmem:[#allocation7 + $0x8] sm:$0xff]
    %v56 = vld [vmem:[#allocation7 + $0x10] sm:$0xff]
    %v57 = vld [vmem:[#allocation2] sm:$0xff]
    %v58 = vld [vmem:[#allocation2 + $0x8] sm:$0xff]
    %v59 = vld [vmem:[#allocation5] sm:$0xff]
    %v60 = vld [vmem:[#allocation5 + $0x8] sm:$0xf]
    %v61 = vld [vmem:[#allocation5 + $0xc] sm:$0xff]
    %v62 = vld [vmem:[#allocation5 + $0x14] sm:$0xf]
    %v63 = vld [vmem:[#allocation5 + $0x18] sm:$0xff]
    %v64 = vld [vmem:[#allocation5 + $0x20] sm:$0xf]
    %v65 = vld [vmem:[#allocation5 + $0x24] sm:$0xff]
    %v66 = vld [vmem:[#allocation5 + $0x2c] sm:$0xf]
    %v67 = vunpack.c.l.bf16 %v59
    %v68 = vunpack.c.h.bf16 %v59
    %v69 = vunpack.c.l.bf16 %v60
    %v70 = vunpack.c.l.bf16 %v61
    %v71 = vunpack.c.h.bf16 %v61
    %v72 = vunpack.c.l.bf16 %v62
    %v73 = vunpack.c.l.bf16 %v63
    %v74 = vunpack.c.h.bf16 %v63
    %v75 = vunpack.c.l.bf16 %v64
    %v76 = vunpack.c.l.bf16 %v65
    %v77 = vunpack.c.h.bf16 %v65
    %v78 = vunpack.c.l.bf16 %v66
    %vm79 = vcmask 261120
    %v81 = vsel %vm79, %v57, 0
    %v84 = vsel %vm79, %v58, 0
    %86 = vmatprep.subr.mxu0 %v68
    %87 = vmatpush1.msra.mxu0 %v67
    %88 = vmatprep.subr.mxu0 %v71
    %89 = vmatpush1.msra.mxu0 %v70
    %90 = vmatprep.subr.mxu0 %v74
    %91 = vmatpush1.msra.mxu0 %v73
    %92 = vmatprep.subr.mxu0 %v77
    %93 = vmatpush1.msra.mxu0 %v76
    %94 = vmatprep.subr.mxu0 0.0
    %95 = vmatpush1.msra.mxu0 0.0
    %96 = vmatprep.subr.mxu0 0.0
    %97 = vmatpush1.msra.mxu0 0.0
    %98 = vmatprep.subr.mxu0 0.0
    %99 = vmatpush1.msra.mxu0 0.0
    %100 = vmatprep.subr.mxu0 0.0
    %101 = vmatpush1.msra.mxu0 0.0
    %102 = vmatprep.subr.mxu0 0.0
    %103 = vmatpush1.msra.mxu0 0.0
    %104 = vmatprep.subr.mxu0 0.0
    %105 = vmatpush1.msra.mxu0 0.0
    %106 = vmatprep.subr.mxu0 0.0
    %107 = vmatpush1.msra.mxu0 0.0
    %108 = vmatprep.subr.mxu0 0.0
    %109 = vmatpush1.msra.mxu0 0.0
    %110 = vmatprep.subr.mxu0 0.0
    %111 = vmatpush1.msra.mxu0 0.0
    %112 = vmatprep.subr.mxu0 0.0
    %113 = vmatpush1.msra.mxu0 0.0
    %114 = vmatprep.subr.mxu0 0.0
    %115 = vmatpush1.msra.mxu0 0.0
    %116 = vmatprep.subr.mxu0 0.0
    %117 = vmatpush1.msra.mxu0 0.0
    %118 = vmatprep.subr.mxu0 0.0
    %119 = vmatpush1.msra.mxu0 0.0
    %120 = vmatprep.subr.mxu0 0.0
    %121 = vmatpush1.msra.mxu0 0.0
    %122 = vmatprep.subr.mxu0 0.0
    %123 = vmatpush1.msra.mxu0 0.0
    %124 = vmatprep.subr.mxu0 0.0
    %125 = vmatpush1.msra.mxu0 0.0
    %126 = vmatprep.subr.mxu0 0.0
    %127 = vmatpush1.msra.mxu0 0.0
    %128 = vmatprep.subr.mxu0 0.0
    %129 = vmatpush1.msra.mxu0 0.0
    %130 = vmatprep.subr.mxu0 0.0
    %131 = vmatpush1.msra.mxu0 0.0
    %132 = vmatprep.subr.mxu0 0.0
    %133 = vmatpush1.msra.mxu0 0.0
    %134 = vmatprep.subr.mxu0 0.0
    %135 = vmatpush1.msra.mxu0 0.0
    %136 = vmatprep.subr.mxu0 0.0
    %137 = vmatpush1.msra.mxu0 0.0
    %138 = vmatprep.subr.mxu0 0.0
    %139 = vmatpush1.msra.mxu0 0.0
    %140 = vmatprep.subr.mxu0 0.0
    %141 = vmatpush1.msra.mxu0 0.0
    %142 = vmatprep.subr.mxu0 0.0
    %143 = vmatpush1.msra.mxu0 0.0
    %144 = vmatprep.subr.mxu0 0.0
    %145 = vmatpush1.msra.mxu0 0.0
    %146 = vmatprep.subr.mxu0 0.0
    %147 = vmatpush1.msra.mxu0 0.0
    %148 = vmatprep.subr.mxu0 0.0
    %149 = vmatpush1.msra.mxu0 0.0
    %150 = vmatprep.mubr.f32.mxu0 0.0
    %151 = vmatmul.mubr.f32.gmra.mrb[0].mxu0 %v81
    %v152 = vpop.f32.mrb[0].mxu0
    %v153 = vadd.f32 0.0, %v152
    %v154 = vpop.f32.mrb[0].mxu0
    %v155 = vadd.f32 0.0, %v154
    %156 = vmatprep.mubr.f32.mxu0 0.0
    %157 = vmatmul.mubr.f32.gmra.mrb[0].mxu0 %v84
    %v158 = vpop.f32.mrb[0].mxu0
    %v159 = vadd.f32 0.0, %v158
    %v160 = vpop.f32.mrb[0].mxu0
    %v161 = vadd.f32 0.0, %v160
    %162 = vdwg.mxu0
    %163 = vmatprep.subr.mxu0 0.0
    %164 = vmatpush1.msra.mxu0 %v69
    %165 = vmatprep.subr.mxu0 0.0
    %166 = vmatpush1.msra.mxu0 %v72
    %167 = vmatprep.subr.mxu0 0.0
    %168 = vmatpush1.msra.mxu0 %v75
    %169 = vmatprep.subr.mxu0 0.0
    %170 = vmatpush1.msra.mxu0 %v78
    %171 = vmatprep.subr.mxu0 0.0
    %172 = vmatpush1.msra.mxu0 0.0
    %173 = vmatprep.subr.mxu0 0.0
    %174 = vmatpush1.msra.mxu0 0.0
    %175 = vmatprep.subr.mxu0 0.0
    %176 = vmatpush1.msra.mxu0 0.0
    %177 = vmatprep.subr.mxu0 0.0
    %178 = vmatpush1.msra.mxu0 0.0
    %179 = vmatprep.subr.mxu0 0.0
    %180 = vmatpush1.msra.mxu0 0.0
    %181 = vmatprep.subr.mxu0 0.0
    %182 = vmatpush1.msra.mxu0 0.0
    %183 = vmatprep.subr.mxu0 0.0
    %184 = vmatpush1.msra.mxu0 0.0
    %185 = vmatprep.subr.mxu0 0.0
    %186 = vmatpush1.msra.mxu0 0.0
    %187 = vmatprep.subr.mxu0 0.0
    %188 = vmatpush1.msra.mxu0 0.0
    %189 = vmatprep.subr.mxu0 0.0
    %190 = vmatpush1.msra.mxu0 0.0
    %191 = vmatprep.subr.mxu0 0.0
    %192 = vmatpush1.msra.mxu0 0.0
    %193 = vmatprep.subr.mxu0 0.0
    %194 = vmatpush1.msra.mxu0 0.0
    %195 = vmatprep.subr.mxu0 0.0
    %196 = vmatpush1.msra.mxu0 0.0
    %197 = vmatprep.subr.mxu0 0.0
    %198 = vmatpush1.msra.mxu0 0.0
    %199 = vmatprep.subr.mxu0 0.0
    %200 = vmatpush1.msra.mxu0 0.0
    %201 = vmatprep.subr.mxu0 0.0
    %202 = vmatpush1.msra.mxu0 0.0
    %203 = vmatprep.subr.mxu0 0.0
    %204 = vmatpush1.msra.mxu0 0.0
    %205 = vmatprep.subr.mxu0 0.0
    %206 = vmatpush1.msra.mxu0 0.0
    %207 = vmatprep.subr.mxu0 0.0
    %208 = vmatpush1.msra.mxu0 0.0
    %209 = vmatprep.subr.mxu0 0.0
    %210 = vmatpush1.msra.mxu0 0.0
    %211 = vmatprep.subr.mxu0 0.0
    %212 = vmatpush1.msra.mxu0 0.0
    %213 = vmatprep.subr.mxu0 0.0
    %214 = vmatpush1.msra.mxu0 0.0
    %215 = vmatprep.subr.mxu0 0.0
    %216 = vmatpush1.msra.mxu0 0.0
    %217 = vmatprep.subr.mxu0 0.0
    %218 = vmatpush1.msra.mxu0 0.0
    %219 = vmatprep.subr.mxu0 0.0
    %220 = vmatpush1.msra.mxu0 0.0
    %221 = vmatprep.subr.mxu0 0.0
    %222 = vmatpush1.msra.mxu0 0.0
    %223 = vmatprep.subr.mxu0 0.0
    %224 = vmatpush1.msra.mxu0 0.0
    %225 = vmatprep.subr.mxu0 0.0
    %226 = vmatpush1.msra.mxu0 0.0
    %227 = vmatprep.mubr.f32.mxu0 0.0
    %228 = vmatmul.mubr.f32.gmra.mrb[0].mxu0 %v81
    %v229 = vpop.f32.mrb[0].mxu0
    %v230 = vadd.f32 0.0, %v229
    %v231 = vpop.f32.mrb[0].mxu0
    %232 = vmatprep.mubr.f32.mxu0 0.0
    %233 = vmatmul.mubr.f32.gmra.mrb[0].mxu0 %v84
    %v234 = vpop.f32.mrb[0].mxu0
    %v235 = vadd.f32 0.0, %v234
    %v236 = vpop.f32.mrb[0].mxu0
    %237 = vdwg.mxu0
    %v238 = vmul.f32 %v153, %v153
    %v239 = vmul.f32 %v155, %v155
    %v240 = vmul.f32 %v230, %v230
    %v241 = vmul.f32 %v159, %v159
    %v242 = vmul.f32 %v161, %v161
    %v243 = vmul.f32 %v235, %v235
    %vm244 = vcmask 130048
    %v246 = vsel %vm244, 1.0, 0
    %248 = vmatprep.subr.mxu0 %v155
    %249 = vmatpush1.msra.mxu0 %v153
    %250 = vmatprep.subr.mxu0 %v161
    %251 = vmatpush1.msra.mxu0 %v159
    %252 = vmatprep.subr.mxu0 0.0
    %253 = vmatpush1.msra.mxu0 0.0
    %254 = vmatprep.subr.mxu0 0.0
    %255 = vmatpush1.msra.mxu0 0.0
    %256 = vmatprep.subr.mxu0 0.0
    %257 = vmatpush1.msra.mxu0 0.0
    %258 = vmatprep.subr.mxu0 0.0
    %259 = vmatpush1.msra.mxu0 0.0
    %260 = vmatprep.subr.mxu0 0.0
    %261 = vmatpush1.msra.mxu0 0.0
    %262 = vmatprep.subr.mxu0 0.0
    %263 = vmatpush1.msra.mxu0 0.0
    %264 = vmatprep.subr.mxu0 0.0
    %265 = vmatpush1.msra.mxu0 0.0
    %266 = vmatprep.subr.mxu0 0.0
    %267 = vmatpush1.msra.mxu0 0.0
    %268 = vmatprep.subr.mxu0 0.0
    %269 = vmatpush1.msra.mxu0 0.0
    %270 = vmatprep.subr.mxu0 0.0
    %271 = vmatpush1.msra.mxu0 0.0
    %272 = vmatprep.subr.mxu0 0.0
    %273 = vmatpush1.msra.mxu0 0.0
    %274 = vmatprep.subr.mxu0 0.0
    %275 = vmatpush1.msra.mxu0 0.0
    %276 = vmatprep.subr.mxu0 0.0
    %277 = vmatpush1.msra.mxu0 0.0
    %278 = vmatprep.subr.mxu0 0.0
    %279 = vmatpush1.msra.mxu0 0.0
    %280 = vmatprep.subr.mxu0 0.0
    %281 = vmatpush1.msra.mxu0 0.0
    %282 = vmatprep.subr.mxu0 0.0
    %283 = vmatpush1.msra.mxu0 0.0
    %284 = vmatprep.subr.mxu0 0.0
    %285 = vmatpush1.msra.mxu0 0.0
    %286 = vmatprep.subr.mxu0 0.0
    %287 = vmatpush1.msra.mxu0 0.0
    %288 = vmatprep.subr.mxu0 0.0
    %289 = vmatpush1.msra.mxu0 0.0
    %290 = vmatprep.subr.mxu0 0.0
    %291 = vmatpush1.msra.mxu0 0.0
    %292 = vmatprep.subr.mxu0 0.0
    %293 = vmatpush1.msra.mxu0 0.0
    %294 = vmatprep.subr.mxu0 0.0
    %295 = vmatpush1.msra.mxu0 0.0
    %296 = vmatprep.subr.mxu0 0.0
    %297 = vmatpush1.msra.mxu0 0.0
    %298 = vmatprep.subr.mxu0 0.0
    %299 = vmatpush1.msra.mxu0 0.0
    %300 = vmatprep.subr.mxu0 0.0
    %301 = vmatpush1.msra.mxu0 0.0
    %302 = vmatprep.subr.mxu0 0.0
    %303 = vmatpush1.msra.mxu0 0.0
    %304 = vmatprep.subr.mxu0 0.0
    %305 = vmatpush1.msra.mxu0 0.0
    %306 = vmatprep.subr.mxu0 0.0
    %307 = vmatpush1.msra.mxu0 0.0
    %308 = vmatprep.subr.mxu0 0.0
    %309 = vmatpush1.msra.mxu0 0.0
    %310 = vmatprep.subr.mxu0 0.0
    %311 = vmatpush1.msra.mxu0 0.0
    %312 = vmatprep.mubr.f32.mxu0 0.0
    %313 = vmatmul.mubr.f32.gmra.mrb[0].mxu0 %v246
    %v314 = vpop.f32.mrb[0].mxu0
    %v315 = vadd.f32 0.0, %v314
    %v316 = vpop.f32.mrb[0].mxu0
    %v317 = vadd.f32 0.0, %v316
    %318 = vdwg.mxu0
    %319 = vmatprep.subr.mxu0 %v238
    %320 = vmatpush1.msra.mxu0 %v230
    %321 = vmatprep.subr.mxu0 %v241
    %322 = vmatpush1.msra.mxu0 %v235
    %323 = vmatprep.subr.mxu0 0.0
    %324 = vmatpush1.msra.mxu0 0.0
    %325 = vmatprep.subr.mxu0 0.0
    %326 = vmatpush1.msra.mxu0 0.0
    %327 = vmatprep.subr.mxu0 0.0
    %328 = vmatpush1.msra.mxu0 0.0
    %329 = vmatprep.subr.mxu0 0.0
    %330 = vmatpush1.msra.mxu0 0.0
    %331 = vmatprep.subr.mxu0 0.0
    %332 = vmatpush1.msra.mxu0 0.0
    %333 = vmatprep.subr.mxu0 0.0
    %334 = vmatpush1.msra.mxu0 0.0
    %335 = vmatprep.subr.mxu0 0.0
    %336 = vmatpush1.msra.mxu0 0.0
    %337 = vmatprep.subr.mxu0 0.0
    %338 = vmatpush1.msra.mxu0 0.0
    %339 = vmatprep.subr.mxu0 0.0
    %340 = vmatpush1.msra.mxu0 0.0
    %341 = vmatprep.subr.mxu0 0.0
    %342 = vmatpush1.msra.mxu0 0.0
    %343 = vmatprep.subr.mxu0 0.0
    %344 = vmatpush1.msra.mxu0 0.0
    %345 = vmatprep.subr.mxu0 0.0
    %346 = vmatpush1.msra.mxu0 0.0
    %347 = vmatprep.subr.mxu0 0.0
    %348 = vmatpush1.msra.mxu0 0.0
    %349 = vmatprep.subr.mxu0 0.0
    %350 = vmatpush1.msra.mxu0 0.0
    %351 = vmatprep.subr.mxu0 0.0
    %352 = vmatpush1.msra.mxu0 0.0
    %353 = vmatprep.subr.mxu0 0.0
    %354 = vmatpush1.msra.mxu0 0.0
    %355 = vmatprep.subr.mxu0 0.0
    %356 = vmatpush1.msra.mxu0 0.0
    %357 = vmatprep.subr.mxu0 0.0
    %358 = vmatpush1.msra.mxu0 0.0
    %359 = vmatprep.subr.mxu0 0.0
    %360 = vmatpush1.msra.mxu0 0.0
    %361 = vmatprep.subr.mxu0 0.0
    %362 = vmatpush1.msra.mxu0 0.0
    %363 = vmatprep.subr.mxu0 0.0
    %364 = vmatpush1.msra.mxu0 0.0
    %365 = vmatprep.subr.mxu0 0.0
    %366 = vmatpush1.msra.mxu0 0.0
    %367 = vmatprep.subr.mxu0 0.0
    %368 = vmatpush1.msra.mxu0 0.0
    %369 = vmatprep.subr.mxu0 0.0
    %370 = vmatpush1.msra.mxu0 0.0
    %371 = vmatprep.subr.mxu0 0.0
    %372 = vmatpush1.msra.mxu0 0.0
    %373 = vmatprep.subr.mxu0 0.0
    %374 = vmatpush1.msra.mxu0 0.0
    %375 = vmatprep.subr.mxu0 0.0
    %376 = vmatpush1.msra.mxu0 0.0
    %377 = vmatprep.subr.mxu0 0.0
    %378 = vmatpush1.msra.mxu0 0.0
    %379 = vmatprep.subr.mxu0 0.0
    %380 = vmatpush1.msra.mxu0 0.0
    %381 = vmatprep.subr.mxu0 0.0
    %382 = vmatpush1.msra.mxu0 0.0
    %383 = vmatprep.mubr.f32.mxu0 0.0
    %384 = vmatmul.mubr.f32.gmra.mrb[0].mxu0 %v246
    %v385 = vpop.f32.mrb[0].mxu0
    %v386 = vadd.f32 0.0, %v385
    %v387 = vpop.f32.mrb[0].mxu0
    %v388 = vadd.f32 0.0, %v387
    %389 = vdwg.mxu0
    %390 = vmatprep.subr.mxu0 %v240
    %391 = vmatpush1.msra.mxu0 %v239
    %392 = vmatprep.subr.mxu0 %v243
    %393 = vmatpush1.msra.mxu0 %v242
    %394 = vmatprep.subr.mxu0 0.0
    %395 = vmatpush1.msra.mxu0 0.0
    %396 = vmatprep.subr.mxu0 0.0
    %397 = vmatpush1.msra.mxu0 0.0
    %398 = vmatprep.subr.mxu0 0.0
    %399 = vmatpush1.msra.mxu0 0.0
    %400 = vmatprep.subr.mxu0 0.0
    %401 = vmatpush1.msra.mxu0 0.0
    %402 = vmatprep.subr.mxu0 0.0
    %403 = vmatpush1.msra.mxu0 0.0
    %404 = vmatprep.subr.mxu0 0.0
    %405 = vmatpush1.msra.mxu0 0.0
    %406 = vmatprep.subr.mxu0 0.0
    %407 = vmatpush1.msra.mxu0 0.0
    %408 = vmatprep.subr.mxu0 0.0
    %409 = vmatpush1.msra.mxu0 0.0
    %410 = vmatprep.subr.mxu0 0.0
    %411 = vmatpush1.msra.mxu0 0.0
    %412 = vmatprep.subr.mxu0 0.0
    %413 = vmatpush1.msra.mxu0 0.0
    %414 = vmatprep.subr.mxu0 0.0
    %415 = vmatpush1.msra.mxu0 0.0
    %416 = vmatprep.subr.mxu0 0.0
    %417 = vmatpush1.msra.mxu0 0.0
    %418 = vmatprep.subr.mxu0 0.0
    %419 = vmatpush1.msra.mxu0 0.0
    %420 = vmatprep.subr.mxu0 0.0
    %421 = vmatpush1.msra.mxu0 0.0
    %422 = vmatprep.subr.mxu0 0.0
    %423 = vmatpush1.msra.mxu0 0.0
    %424 = vmatprep.subr.mxu0 0.0
    %425 = vmatpush1.msra.mxu0 0.0
    %426 = vmatprep.subr.mxu0 0.0
    %427 = vmatpush1.msra.mxu0 0.0
    %428 = vmatprep.subr.mxu0 0.0
    %429 = vmatpush1.msra.mxu0 0.0
    %430 = vmatprep.subr.mxu0 0.0
    %431 = vmatpush1.msra.mxu0 0.0
    %432 = vmatprep.subr.mxu0 0.0
    %433 = vmatpush1.msra.mxu0 0.0
    %434 = vmatprep.subr.mxu0 0.0
    %435 = vmatpush1.msra.mxu0 0.0
    %436 = vmatprep.subr.mxu0 0.0
    %437 = vmatpush1.msra.mxu0 0.0
    %438 = vmatprep.subr.mxu0 0.0
    %439 = vmatpush1.msra.mxu0 0.0
    %440 = vmatprep.subr.mxu0 0.0
    %441 = vmatpush1.msra.mxu0 0.0
    %442 = vmatprep.subr.mxu0 0.0
    %443 = vmatpush1.msra.mxu0 0.0
    %444 = vmatprep.subr.mxu0 0.0
    %445 = vmatpush1.msra.mxu0 0.0
    %446 = vmatprep.subr.mxu0 0.0
    %447 = vmatpush1.msra.mxu0 0.0
    %448 = vmatprep.subr.mxu0 0.0
    %449 = vmatpush1.msra.mxu0 0.0
    %450 = vmatprep.subr.mxu0 0.0
    %451 = vmatpush1.msra.mxu0 0.0
    %452 = vmatprep.subr.mxu0 0.0
    %453 = vmatpush1.msra.mxu0 0.0
    %454 = vmatprep.mubr.f32.mxu0 0.0
    %455 = vmatmul.mubr.f32.gmra.mrb[0].mxu0 %v246
    %v456 = vpop.f32.mrb[0].mxu0
    %v457 = vadd.f32 0.0, %v456
    %v458 = vpop.f32.mrb[0].mxu0
    %v459 = vadd.f32 0.0, %v458
    %460 = vdwg.mxu0
    %v461 = vmul.f32 %v315, 0.0625
    %v462 = vmul.f32 %v317, 0.0625
    %v463 = vmul.f32 %v386, 0.0625
    %v464 = vmul.f32 %v388, 0.0625
    %v465 = vmul.f32 %v457, 0.0625
    %v466 = vmul.f32 %v459, 0.0625
    %v467 = vmul.f32 %v461, %v461
    %v468 = vmul.f32 %v462, %v462
    %v469 = vmul.f32 %v463, %v463
    %v470 = vsub.f32 %v464, %v467
    %v471 = vsub.f32 %v465, %v468
    %v472 = vsub.f32 %v466, %v469
    %v473 = vadd.f32 %v470, 1e-05
    %v474 = vadd.f32 %v471, 1e-05
    %v475 = vadd.f32 %v472, 1e-05
    %v476 = vrsqrt.pop %v473
    %v477 = vrsqrt.pop %v474
    %v478 = vrsqrt.pop %v475
    %v479 = vmul.f32 %v54, %v476
    %v480 = vmul.f32 %v55, %v477
    %v481 = vmul.f32 %v56, %v478
    %v482 = vmul.f32 %v479, %v461
    %v483 = vmul.f32 %v480, %v462
    %v484 = vmul.f32 %v481, %v463
    %v488 = vrot.slane %v482, 7
    %v489 = vrot.slane %v483, 7
    %v490 = vrot.slane %v484, 7
    %v494 = vsub.f32 %v54, %v488
    %v495 = vsub.f32 %v55, %v489
    %v496 = vsub.f32 %v56, %v490
    %v497 = vlaneseq
    %v498 = vshrl.u32 %v497, 7
    %v499 = vsub.s32 0, %v498
    %v500 = vrot.slane %v479, %v499
    %v501 = vlaneseq
    %v502 = vshrl.u32 %v501, 7
    %v503 = vsub.s32 0, %v502
    %v504 = vrot.slane %v480, %v503
    %v505 = vlaneseq
    %v506 = vshrl.u32 %v505, 7
    %v507 = vsub.s32 0, %v506
    %v508 = vrot.slane %v481, %v507
    %v509 = vmul.f32 %v500, %v153
    %v510 = vmul.f32 %v504, %v155
    %v511 = vmul.f32 %v508, %v230
    %v512 = vmul.f32 %v500, %v159
    %v513 = vmul.f32 %v504, %v161
    %v514 = vmul.f32 %v508, %v235
    %v515 = vlaneseq
    %v516 = vshrl.u32 %v515, 7
    %v517 = vsub.s32 1, %v516
    %v518 = vrot.slane %v494, %v517
    %v519 = vlaneseq
    %v520 = vshrl.u32 %v519, 7
    %v521 = vsub.s32 1, %v520
    %v522 = vrot.slane %v495, %v521
    %v523 = vlaneseq
    %v524 = vshrl.u32 %v523, 7
    %v525 = vsub.s32 1, %v524
    %v526 = vrot.slane %v496, %v525
    %v527 = vadd.f32 %v509, %v518
    %v528 = vadd.f32 %v510, %v522
    %v529 = vadd.f32 %v511, %v526
    %v530 = vadd.f32 %v512, %v518
    %v531 = vadd.f32 %v513, %v522
    %v532 = vadd.f32 %v514, %v526
    %v533 = vmul.f32 %v527, 0.01
    %v534 = vmul.f32 %v528, 0.01
    %v535 = vmul.f32 %v529, 0.01
    %v536 = vmul.f32 %v530, 0.01
    %v537 = vmul.f32 %v531, 0.01
    %v538 = vmul.f32 %v532, 0.01
    %v539 = vmax.f32 %v527, %v533
    %v540 = vmax.f32 %v528, %v534
    %v541 = vmax.f32 %v529, %v535
    %v542 = vmax.f32 %v530, %v536
    %v543 = vmax.f32 %v531, %v537
    %v544 = vmax.f32 %v532, %v538
    %v545 = vld [vmem:[#allocation5 + $0x30] sm:$0xff]
    %v546 = vld [vmem:[#allocation5 + $0x3c] sm:$0xff]
    %v547 = vld [vmem:[#allocation5 + $0x48] sm:$0xff]
    %v548 = vld [vmem:[#allocation5 + $0x54] sm:$0xff]
    %v549 = vld [vmem:[#allocation5 + $0x60] sm:$0xff]
    %v550 = vld [vmem:[#allocation5 + $0x6c] sm:$0xff]
    %v551 = vld [vmem:[#allocation5 + $0x78] sm:$0xff]
    %v552 = vld [vmem:[#allocation5 + $0x84] sm:$0xff]
    %v553 = vld [vmem:[#allocation5 + $0x90] sm:$0xff]
    %v554 = vld [vmem:[#allocation5 + $0x9c] sm:$0xff]
    %v555 = vld [vmem:[#allocation5 + $0xa8] sm:$0xff]
    %v556 = vld [vmem:[#allocation5 + $0xb4] sm:$0xff]
    %v557 = vld [vmem:[#allocation5 + $0xc0] sm:$0xff]
    %v558 = vld [vmem:[#allocation5 + $0xcc] sm:$0xff]
    %v559 = vld [vmem:[#allocation5 + $0xd8] sm:$0xff]
    %v560 = vld [vmem:[#allocation5 + $0xe4] sm:$0xff]
    %v561 = vld [vmem:[#allocation5 + $0xf0] sm:$0xff]
    %v562 = vld [vmem:[#allocation5 + $0xfc] sm:$0xff]
    %v563 = vld [vmem:[#allocation5 + $0x108] sm:$0xff]
    %v564 = vld [vmem:[#allocation5 + $0x114] sm:$0xff]
    %v565 = vld [vmem:[#allocation5 + $0x120] sm:$0xff]
    %v566 = vld [vmem:[#allocation5 + $0x12c] sm:$0xff]
    %v567 = vld [vmem:[#allocation5 + $0x138] sm:$0xff]
    %v568 = vld [vmem:[#allocation5 + $0x144] sm:$0xff]
    %v569 = vld [vmem:[#allocation5 + $0x150] sm:$0xff]
    %v570 = vld [vmem:[#allocation5 + $0x15c] sm:$0xff]
    %v571 = vld [vmem:[#allocation5 + $0x168] sm:$0xff]
    %v572 = vld [vmem:[#allocation5 + $0x174] sm:$0xff]
    %v573 = vld [vmem:[#allocation5 + $0x180] sm:$0xff]
    %v574 = vld [vmem:[#allocation5 + $0x18c] sm:$0xff]
    %v575 = vld [vmem:[#allocation5 + $0x198] sm:$0xff]
    %v576 = vld [vmem:[#allocation5 + $0x1a4] sm:$0xff]
    %v577 = vld [vmem:[#allocation5 + $0x1b0] sm:$0xff]
    %v578 = vld [vmem:[#allocation5 + $0x1bc] sm:$0xff]
    %v579 = vld [vmem:[#allocation5 + $0x1c8] sm:$0xff]
    %v580 = vld [vmem:[#allocation5 + $0x1d4] sm:$0xff]
    %v581 = vld [vmem:[#allocation5 + $0x1e0] sm:$0xff]
    %v582 = vld [vmem:[#allocation5 + $0x1ec] sm:$0xff]
    %v583 = vld [vmem:[#allocation5 + $0x1f8] sm:$0xff]
    %v584 = vld [vmem:[#allocation5 + $0x204] sm:$0xff]
    %v585 = vld [vmem:[#allocation5 + $0x210] sm:$0xff]
    %v586 = vld [vmem:[#allocation5 + $0x21c] sm:$0xff]
    %v587 = vld [vmem:[#allocation5 + $0x228] sm:$0xff]
    %v588 = vld [vmem:[#allocation5 + $0x234] sm:$0xff]
    %v589 = vld [vmem:[#allocation5 + $0x240] sm:$0xff]
    %v590 = vld [vmem:[#allocation5 + $0x24c] sm:$0xff]
    %v591 = vld [vmem:[#allocation5 + $0x258] sm:$0xff]
    %v592 = vld [vmem:[#allocation5 + $0x264] sm:$0xff]
    %v593 = vunpack.c.l.bf16 %v545
    %v594 = vunpack.c.h.bf16 %v545
    %v595 = vunpack.c.l.bf16 %v546
    %v596 = vunpack.c.h.bf16 %v546
    %v597 = vunpack.c.l.bf16 %v547
    %v598 = vunpack.c.h.bf16 %v547
    %v599 = vunpack.c.l.bf16 %v548
    %v600 = vunpack.c.h.bf16 %v548
    %v601 = vunpack.c.l.bf16 %v549
    %v602 = vunpack.c.h.bf16 %v549
    %v603 = vunpack.c.l.bf16 %v550
    %v604 = vunpack.c.h.bf16 %v550
    %v605 = vunpack.c.l.bf16 %v551
    %v606 = vunpack.c.h.bf16 %v551
    %v607 = vunpack.c.l.bf16 %v552
    %v608 = vunpack.c.h.bf16 %v552
    %v609 = vunpack.c.l.bf16 %v553
    %v610 = vunpack.c.h.bf16 %v553
    %v611 = vunpack.c.l.bf16 %v554
    %v612 = vunpack.c.h.bf16 %v554
    %v613 = vunpack.c.l.bf16 %v555
    %v614 = vunpack.c.h.bf16 %v555
    %v615 = vunpack.c.l.bf16 %v556
    %v616 = vunpack.c.h.bf16 %v556
    %v617 = vunpack.c.l.bf16 %v557
    %v618 = vunpack.c.h.bf16 %v557
    %v619 = vunpack.c.l.bf16 %v558
    %v620 = vunpack.c.h.bf16 %v558
    %v621 = vunpack.c.l.bf16 %v559
    %v622 = vunpack.c.h.bf16 %v559
    %v623 = vunpack.c.l.bf16 %v560
    %v624 = vunpack.c.h.bf16 %v560
    %v625 = vunpack.c.l.bf16 %v561
    %v626 = vunpack.c.h.bf16 %v561
    %v627 = vunpack.c.l.bf16 %v562
    %v628 = vunpack.c.h.bf16 %v562
    %v629 = vunpack.c.l.bf16 %v563
    %v630 = vunpack.c.h.bf16 %v563
    %v631 = vunpack.c.l.bf16 %v564
    %v632 = vunpack.c.h.bf16 %v564
    %v633 = vunpack.c.l.bf16 %v565
    %v634 = vunpack.c.h.bf16 %v565
    %v635 = vunpack.c.l.bf16 %v566
    %v636 = vunpack.c.h.bf16 %v566
    %v637 = vunpack.c.l.bf16 %v567
    %v638 = vunpack.c.h.bf16 %v567
    %v639 = vunpack.c.l.bf16 %v568
    %v640 = vunpack.c.h.bf16 %v568
    %v641 = vunpack.c.l.bf16 %v569
    %v642 = vunpack.c.h.bf16 %v569
    %v643 = vunpack.c.l.bf16 %v570
    %v644 = vunpack.c.h.bf16 %v570
    %v645 = vunpack.c.l.bf16 %v571
    %v646 = vunpack.c.h.bf16 %v571
    %v647 = vunpack.c.l.bf16 %v572
    %v648 = vunpack.c.h.bf16 %v572
    %v649 = vunpack.c.l.bf16 %v573
    %v650 = vunpack.c.h.bf16 %v573
    %v651 = vunpack.c.l.bf16 %v574
    %v652 = vunpack.c.h.bf16 %v574
    %v653 = vunpack.c.l.bf16 %v575
    %v654 = vunpack.c.h.bf16 %v575
    %v655 = vunpack.c.l.bf16 %v576
    %v656 = vunpack.c.h.bf16 %v576
    %v657 = vunpack.c.l.bf16 %v577
    %v658 = vunpack.c.h.bf16 %v577
    %v659 = vunpack.c.l.bf16 %v578
    %v660 = vunpack.c.h.bf16 %v578
    %v661 = vunpack.c.l.bf16 %v579
    %v662 = vunpack.c.h.bf16 %v579
    %v663 = vunpack.c.l.bf16 %v580
    %v664 = vunpack.c.h.bf16 %v580
    %v665 = vunpack.c.l.bf16 %v581
    %v666 = vunpack.c.h.bf16 %v581
    %v667 = vunpack.c.l.bf16 %v582
    %v668 = vunpack.c.h.bf16 %v582
    %v669 = vunpack.c.l.bf16 %v583
    %v670 = vunpack.c.h.bf16 %v583
    %v671 = vunpack.c.l.bf16 %v584
    %v672 = vunpack.c.h.bf16 %v584
    %v673 = vunpack.c.l.bf16 %v585
    %v674 = vunpack.c.h.bf16 %v585
    %v675 = vunpack.c.l.bf16 %v586
    %v676 = vunpack.c.h.bf16 %v586
    %v677 = vunpack.c.l.bf16 %v587
    %v678 = vunpack.c.h.bf16 %v587
    %v679 = vunpack.c.l.bf16 %v588
    %v680 = vunpack.c.h.bf16 %v588
    %v681 = vunpack.c.l.bf16 %v589
    %v682 = vunpack.c.h.bf16 %v589
    %v683 = vunpack.c.l.bf16 %v590
    %v684 = vunpack.c.h.bf16 %v590
    %v685 = vunpack.c.l.bf16 %v591
    %v686 = vunpack.c.h.bf16 %v591
    %v687 = vunpack.c.l.bf16 %v592
    %v688 = vunpack.c.h.bf16 %v592
    %689 = vmatprep.subr.mxu0 %v594
    %690 = vmatpush1.msra.mxu0 %v593
    %691 = vmatprep.subr.mxu0 %v596
    %692 = vmatpush1.msra.mxu0 %v595
    %693 = vmatprep.subr.mxu0 %v598
    %694 = vmatpush1.msra.mxu0 %v597
    %695 = vmatprep.subr.mxu0 %v600
    %696 = vmatpush1.msra.mxu0 %v599
    %697 = vmatprep.subr.mxu0 %v602
    %698 = vmatpush1.msra.mxu0 %v601
    %699 = vmatprep.subr.mxu0 %v604
    %700 = vmatpush1.msra.mxu0 %v603
    %701 = vmatprep.subr.mxu0 %v606
    %702 = vmatpush1.msra.mxu0 %v605
    %703 = vmatprep.subr.mxu0 %v608
    %704 = vmatpush1.msra.mxu0 %v607
    %705 = vmatprep.subr.mxu0 %v610
    %706 = vmatpush1.msra.mxu0 %v609
    %707 = vmatprep.subr.mxu0 %v612
    %708 = vmatpush1.msra.mxu0 %v611
    %709 = vmatprep.subr.mxu0 %v614
    %710 = vmatpush1.msra.mxu0 %v613
    %711 = vmatprep.subr.mxu0 %v616
    %712 = vmatpush1.msra.mxu0 %v615
    %713 = vmatprep.subr.mxu0 %v618
    %714 = vmatpush1.msra.mxu0 %v617
    %715 = vmatprep.subr.mxu0 %v620
    %716 = vmatpush1.msra.mxu0 %v619
    %717 = vmatprep.subr.mxu0 %v622
    %718 = vmatpush1.msra.mxu0 %v621
    %719 = vmatprep.subr.mxu0 %v624
    %720 = vmatpush1.msra.mxu0 %v623
    %721 = vmatprep.subr.mxu0 %v626
    %722 = vmatpush1.msra.mxu0 %v625
    %723 = vmatprep.subr.mxu0 %v628
    %724 = vmatpush1.msra.mxu0 %v627
    %725 = vmatprep.subr.mxu0 %v630
    %726 = vmatpush1.msra.mxu0 %v629
    %727 = vmatprep.subr.mxu0 %v632
    %728 = vmatpush1.msra.mxu0 %v631
    %729 = vmatprep.subr.mxu0 %v634
    %730 = vmatpush1.msra.mxu0 %v633
    %731 = vmatprep.subr.mxu0 %v636
    %732 = vmatpush1.msra.mxu0 %v635
    %733 = vmatprep.subr.mxu0 %v638
    %734 = vmatpush1.msra.mxu0 %v637
    %735 = vmatprep.subr.mxu0 %v640
    %736 = vmatpush1.msra.mxu0 %v639
    %737 = vmatprep.subr.mxu0 %v642
    %738 = vmatpush1.msra.mxu0 %v641
    %739 = vmatprep.subr.mxu0 %v644
    %740 = vmatpush1.msra.mxu0 %v643
    %741 = vmatprep.subr.mxu0 %v646
    %742 = vmatpush1.msra.mxu0 %v645
    %743 = vmatprep.subr.mxu0 %v648
    %744 = vmatpush1.msra.mxu0 %v647
    %745 = vmatprep.subr.mxu0 %v650
    %746 = vmatpush1.msra.mxu0 %v649
    %747 = vmatprep.subr.mxu0 %v652
    %748 = vmatpush1.msra.mxu0 %v651
    %749 = vmatprep.subr.mxu0 %v654
    %750 = vmatpush1.msra.mxu0 %v653
    %751 = vmatprep.subr.mxu0 %v656
    %752 = vmatpush1.msra.mxu0 %v655
    %753 = vmatprep.mubr.f32.mxu0 %v540
    %754 = vmatmul.mubr.f32.gmra.mrb[0].mxu0 %v539
    %v755 = vpop.f32.mrb[0].mxu0
    %v756 = vadd.f32 0.0, %v755
    %v757 = vpop.f32.mrb[0].mxu0
    %v758 = vadd.f32 0.0, %v757
    %759 = vmatprep.mubr.f32.mxu0 %v543
    %760 = vmatmul.mubr.f32.gmra.mrb[0].mxu0 %v542
    %v761 = vpop.f32.mrb[0].mxu0
    %v762 = vadd.f32 0.0, %v761
    %v763 = vpop.f32.mrb[0].mxu0
    %v764 = vadd.f32 0.0, %v763
    %765 = vdwg.mxu0
    %766 = vmatprep.subr.mxu0 %v658
    %767 = vmatpush1.msra.mxu0 %v657
    %768 = vmatprep.subr.mxu0 %v660
    %769 = vmatpush1.msra.mxu0 %v659
    %770 = vmatprep.subr.mxu0 %v662
    %771 = vmatpush1.msra.mxu0 %v661
    %772 = vmatprep.subr.mxu0 %v664
    %773 = vmatpush1.msra.mxu0 %v663
    %774 = vmatprep.subr.mxu0 %v666
    %775 = vmatpush1.msra.mxu0 %v665
    %776 = vmatprep.subr.mxu0 %v668
    %777 = vmatpush1.msra.mxu0 %v667
    %778 = vmatprep.subr.mxu0 %v670
    %779 = vmatpush1.msra.mxu0 %v669
    %780 = vmatprep.subr.mxu0 %v672
    %781 = vmatpush1.msra.mxu0 %v671
    %782 = vmatprep.subr.mxu0 %v674
    %783 = vmatpush1.msra.mxu0 %v673
    %784 = vmatprep.subr.mxu0 %v676
    %785 = vmatpush1.msra.mxu0 %v675
    %786 = vmatprep.subr.mxu0 %v678
    %787 = vmatpush1.msra.mxu0 %v677
    %788 = vmatprep.subr.mxu0 %v680
    %789 = vmatpush1.msra.mxu0 %v679
    %790 = vmatprep.subr.mxu0 %v682
    %791 = vmatpush1.msra.mxu0 %v681
    %792 = vmatprep.subr.mxu0 %v684
    %793 = vmatpush1.msra.mxu0 %v683
    %794 = vmatprep.subr.mxu0 %v686
    %795 = vmatpush1.msra.mxu0 %v685
    %796 = vmatprep.subr.mxu0 %v688
    %797 = vmatpush1.msra.mxu0 %v687
    %798 = vmatprep.subr.mxu0 0.0
    %799 = vmatpush1.msra.mxu0 0.0
    %800 = vmatprep.subr.mxu0 0.0
    %801 = vmatpush1.msra.mxu0 0.0
    %802 = vmatprep.subr.mxu0 0.0
    %803 = vmatpush1.msra.mxu0 0.0
    %804 = vmatprep.subr.mxu0 0.0
    %805 = vmatpush1.msra.mxu0 0.0
    %806 = vmatprep.subr.mxu0 0.0
    %807 = vmatpush1.msra.mxu0 0.0
    %808 = vmatprep.subr.mxu0 0.0
    %809 = vmatpush1.msra.mxu0 0.0
    %810 = vmatprep.subr.mxu0 0.0
    %811 = vmatpush1.msra.mxu0 0.0
    %812 = vmatprep.subr.mxu0 0.0
    %813 = vmatpush1.msra.mxu0 0.0
    %814 = vmatprep.subr.mxu0 0.0
    %815 = vmatpush1.msra.mxu0 0.0
    %816 = vmatprep.subr.mxu0 0.0
    %817 = vmatpush1.msra.mxu0 0.0
    %818 = vmatprep.subr.mxu0 0.0
    %819 = vmatpush1.msra.mxu0 0.0
    %820 = vmatprep.subr.mxu0 0.0
    %821 = vmatpush1.msra.mxu0 0.0
    %822 = vmatprep.subr.mxu0 0.0
    %823 = vmatpush1.msra.mxu0 0.0
    %824 = vmatprep.subr.mxu0 0.0
    %825 = vmatpush1.msra.mxu0 0.0
    %826 = vmatprep.subr.mxu0 0.0
    %827 = vmatpush1.msra.mxu0 0.0
    %828 = vmatprep.subr.mxu0 0.0
    %829 = vmatpush1.msra.mxu0 0.0
    %830 = vmatprep.mubr.f32.mxu0 0.0
    %831 = vmatmul.mubr.f32.gmra.mrb[0].mxu0 %v541
    %v832 = vpop.f32.mrb[0].mxu0
    %v833 = vadd.f32 %v756, %v832
    %v834 = vpop.f32.mrb[0].mxu0
    %v835 = vadd.f32 %v758, %v834
    %836 = vmatprep.mubr.f32.mxu0 0.0
    %837 = vmatmul.mubr.f32.gmra.mrb[0].mxu0 %v544
    %v838 = vpop.f32.mrb[0].mxu0
    %v839 = vadd.f32 %v762, %v838
    %v840 = vpop.f32.mrb[0].mxu0
    %v841 = vadd.f32 %v764, %v840
    %842 = vdwg.mxu0
    %v843 = vmul.f32 %v833, %v833
    %v844 = vmul.f32 %v835, %v835
    %v845 = vmul.f32 %v839, %v839
    %v846 = vmul.f32 %v841, %v841
    %847 = vmatprep.subr.mxu0 %v835
    %848 = vmatpush1.msra.mxu0 %v833
    %849 = vmatprep.subr.mxu0 %v841
    %850 = vmatpush1.msra.mxu0 %v839
    %851 = vmatprep.subr.mxu0 0.0
    %852 = vmatpush1.msra.mxu0 0.0
    %853 = vmatprep.subr.mxu0 0.0
    %854 = vmatpush1.msra.mxu0 0.0
    %855 = vmatprep.subr.mxu0 0.0
    %856 = vmatpush1.msra.mxu0 0.0
    %857 = vmatprep.subr.mxu0 0.0
    %858 = vmatpush1.msra.mxu0 0.0
    %859 = vmatprep.subr.mxu0 0.0
    %860 = vmatpush1.msra.mxu0 0.0
    %861 = vmatprep.subr.mxu0 0.0
    %862 = vmatpush1.msra.mxu0 0.0
    %863 = vmatprep.subr.mxu0 0.0
    %864 = vmatpush1.msra.mxu0 0.0
    %865 = vmatprep.subr.mxu0 0.0
    %866 = vmatpush1.msra.mxu0 0.0
    %867 = vmatprep.subr.mxu0 0.0
    %868 = vmatpush1.msra.mxu0 0.0
    %869 = vmatprep.subr.mxu0 0.0
    %870 = vmatpush1.msra.mxu0 0.0
    %871 = vmatprep.subr.mxu0 0.0
    %872 = vmatpush1.msra.mxu0 0.0
    %873 = vmatprep.subr.mxu0 0.0
    %874 = vmatpush1.msra.mxu0 0.0
    %875 = vmatprep.subr.mxu0 0.0
    %876 = vmatpush1.msra.mxu0 0.0
    %877 = vmatprep.subr.mxu0 0.0
    %878 = vmatpush1.msra.mxu0 0.0
    %879 = vmatprep.subr.mxu0 0.0
    %880 = vmatpush1.msra.mxu0 0.0
    %881 = vmatprep.subr.mxu0 0.0
    %882 = vmatpush1.msra.mxu0 0.0
    %883 = vmatprep.subr.mxu0 0.0
    %884 = vmatpush1.msra.mxu0 0.0
    %885 = vmatprep.subr.mxu0 0.0
    %886 = vmatpush1.msra.mxu0 0.0
    %887 = vmatprep.subr.mxu0 0.0
    %888 = vmatpush1.msra.mxu0 0.0
    %889 = vmatprep.subr.mxu0 0.0
    %890 = vmatpush1.msra.mxu0 0.0
    %891 = vmatprep.subr.mxu0 0.0
    %892 = vmatpush1.msra.mxu0 0.0
    %893 = vmatprep.subr.mxu0 0.0
    %894 = vmatpush1.msra.mxu0 0.0
    %895 = vmatprep.subr.mxu0 0.0
    %896 = vmatpush1.msra.mxu0 0.0
    %897 = vmatprep.subr.mxu0 0.0
    %898 = vmatpush1.msra.mxu0 0.0
    %899 = vmatprep.subr.mxu0 0.0
    %900 = vmatpush1.msra.mxu0 0.0
    %901 = vmatprep.subr.mxu0 0.0
    %902 = vmatpush1.msra.mxu0 0.0
    %903 = vmatprep.subr.mxu0 0.0
    %904 = vmatpush1.msra.mxu0 0.0
    %905 = vmatprep.subr.mxu0 0.0
    %906 = vmatpush1.msra.mxu0 0.0
    %907 = vmatprep.subr.mxu0 0.0
    %908 = vmatpush1.msra.mxu0 0.0
    %909 = vmatprep.subr.mxu0 0.0
    %910 = vmatpush1.msra.mxu0 0.0
    %911 = vmatprep.mubr.f32.mxu0 0.0
    %912 = vmatmul.mubr.f32.gmra.mrb[0].mxu0 %v246
    %v913 = vpop.f32.mrb[0].mxu0
    %v914 = vadd.f32 0.0, %v913
    %v915 = vpop.f32.mrb[0].mxu0
    %v916 = vadd.f32 0.0, %v915
    %917 = vdwg.mxu0
    %918 = vmatprep.subr.mxu0 %v844
    %919 = vmatpush1.msra.mxu0 %v843
    %920 = vmatprep.subr.mxu0 %v846
    %921 = vmatpush1.msra.mxu0 %v845
    %922 = vmatprep.subr.mxu0 0.0
    %923 = vmatpush1.msra.mxu0 0.0
    %924 = vmatprep.subr.mxu0 0.0
    %925 = vmatpush1.msra.mxu0 0.0
    %926 = vmatprep.subr.mxu0 0.0
    %927 = vmatpush1.msra.mxu0 0.0
    %928 = vmatprep.subr.mxu0 0.0
    %929 = vmatpush1.msra.mxu0 0.0
    %930 = vmatprep.subr.mxu0 0.0
    %931 = vmatpush1.msra.mxu0 0.0
    %932 = vmatprep.subr.mxu0 0.0
    %933 = vmatpush1.msra.mxu0 0.0
    %934 = vmatprep.subr.mxu0 0.0
    %935 = vmatpush1.msra.mxu0 0.0
    %936 = vmatprep.subr.mxu0 0.0
    %937 = vmatpush1.msra.mxu0 0.0
    %938 = vmatprep.subr.mxu0 0.0
    %939 = vmatpush1.msra.mxu0 0.0
    %940 = vmatprep.subr.mxu0 0.0
    %941 = vmatpush1.msra.mxu0 0.0
    %942 = vmatprep.subr.mxu0 0.0
    %943 = vmatpush1.msra.mxu0 0.0
    %944 = vmatprep.subr.mxu0 0.0
    %945 = vmatpush1.msra.mxu0 0.0
    %946 = vmatprep.subr.mxu0 0.0
    %947 = vmatpush1.msra.mxu0 0.0
    %948 = vmatprep.subr.mxu0 0.0
    %949 = vmatpush1.msra.mxu0 0.0
    %950 = vmatprep.subr.mxu0 0.0
    %951 = vmatpush1.msra.mxu0 0.0
    %952 = vmatprep.subr.mxu0 0.0
    %953 = vmatpush1.msra.mxu0 0.0
    %954 = vmatprep.subr.mxu0 0.0
    %955 = vmatpush1.msra.mxu0 0.0
    %956 = vmatprep.subr.mxu0 0.0
    %957 = vmatpush1.msra.mxu0 0.0
    %958 = vmatprep.subr.mxu0 0.0
    %959 = vmatpush1.msra.mxu0 0.0
    %960 = vmatprep.subr.mxu0 0.0
    %961 = vmatpush1.msra.mxu0 0.0
    %962 = vmatprep.subr.mxu0 0.0
    %963 = vmatpush1.msra.mxu0 0.0
    %964 = vmatprep.subr.mxu0 0.0
    %965 = vmatpush1.msra.mxu0 0.0
    %966 = vmatprep.subr.mxu0 0.0
    %967 = vmatpush1.msra.mxu0 0.0
    %968 = vmatprep.subr.mxu0 0.0
    %969 = vmatpush1.msra.mxu0 0.0
    %970 = vmatprep.subr.mxu0 0.0
    %971 = vmatpush1.msra.mxu0 0.0
    %972 = vmatprep.subr.mxu0 0.0
    %973 = vmatpush1.msra.mxu0 0.0
    %974 = vmatprep.subr.mxu0 0.0
    %975 = vmatpush1.msra.mxu0 0.0
    %976 = vmatprep.subr.mxu0 0.0
    %977 = vmatpush1.msra.mxu0 0.0
    %978 = vmatprep.subr.mxu0 0.0
    %979 = vmatpush1.msra.mxu0 0.0
    %980 = vmatprep.subr.mxu0 0.0
    %981 = vmatpush1.msra.mxu0 0.0
    %982 = vmatprep.mubr.f32.mxu0 0.0
    %983 = vmatmul.mubr.f32.gmra.mrb[0].mxu0 %v246
    %v984 = vpop.f32.mrb[0].mxu0
    %v985 = vadd.f32 0.0, %v984
    %v986 = vpop.f32.mrb[0].mxu0
    %v987 = vadd.f32 0.0, %v986
    %988 = vdwg.mxu0
    %v989 = vmul.f32 %v914, 0.0625
    %v990 = vmul.f32 %v916, 0.0625
    %v991 = vmul.f32 %v985, 0.0625
    %v992 = vmul.f32 %v987, 0.0625
    %v993 = vmul.f32 %v989, %v989
    %v994 = vmul.f32 %v990, %v990
    %v995 = vsub.f32 %v991, %v993
    %v996 = vsub.f32 %v992, %v994
    %v997 = vadd.f32 %v995, 1e-05
    %v998 = vadd.f32 %v996, 1e-05
    %v999 = vrsqrt.pop %v997
    %v1000 = vrsqrt.pop %v998
    %v1003 = vrot.slane %v999, 6
    %v1004 = vrot.slane %v1000, 6
    %v1007 = vmul.f32 %v54, %v1003
    %v1008 = vmul.f32 %v55, %v1004
    %v1011 = vrot.slane %v989, 6
    %v1012 = vrot.slane %v990, 6
    %v1015 = vmul.f32 %v1007, %v1011
    %v1016 = vmul.f32 %v1008, %v1012
    %v1019 = vrot.slane %v1015, 7
    %v1020 = vrot.slane %v1016, 7
    %v1023 = vsub.f32 %v54, %v1019
    %v1024 = vsub.f32 %v55, %v1020
    %v1025 = vlaneseq
    %v1026 = vshrl.u32 %v1025, 7
    %v1027 = vsub.s32 2, %v1026
    %v1028 = vrot.slane %v1007, %v1027
    %v1029 = vlaneseq
    %v1030 = vshrl.u32 %v1029, 7
    %v1031 = vsub.s32 2, %v1030
    %v1032 = vrot.slane %v1008, %v1031
    %v1033 = vmul.f32 %v1028, %v833
    %v1034 = vmul.f32 %v1032, %v835
    %v1035 = vmul.f32 %v1028, %v839
    %v1036 = vmul.f32 %v1032, %v841
    %v1037 = vlaneseq
    %v1038 = vshrl.u32 %v1037, 7
    %v1039 = vsub.s32 3, %v1038
    %v1040 = vrot.slane %v1023, %v1039
    %v1041 = vlaneseq
    %v1042 = vshrl.u32 %v1041, 7
    %v1043 = vsub.s32 3, %v1042
    %v1044 = vrot.slane %v1024, %v1043
    %v1045 = vadd.f32 %v1033, %v1040
    %v1046 = vadd.f32 %v1034, %v1044
    %v1047 = vadd.f32 %v1035, %v1040
    %v1048 = vadd.f32 %v1036, %v1044
    %v1049 = vmul.f32 %v1045, 0.01
    %v1050 = vmul.f32 %v1046, 0.01
    %v1051 = vmul.f32 %v1047, 0.01
    %v1052 = vmul.f32 %v1048, 0.01
    %v1053 = vmax.f32 %v1045, %v1049
    %v1054 = vmax.f32 %v1046, %v1050
    %v1055 = vmax.f32 %v1047, %v1051
    %v1056 = vmax.f32 %v1048, %v1052
    %v1057 = vld [vmem:[#allocation5 + $0x270] sm:$0xf]
    %v1058 = vld [vmem:[#allocation5 + $0x27c] sm:$0xf]
    %v1059 = vld [vmem:[#allocation5 + $0x288] sm:$0xf]
    %v1060 = vld [vmem:[#allocation5 + $0x294] sm:$0xf]
    %v1061 = vld [vmem:[#allocation5 + $0x2a0] sm:$0xf]
    %v1062 = vld [vmem:[#allocation5 + $0x2ac] sm:$0xf]
    %v1063 = vld [vmem:[#allocation5 + $0x2b8] sm:$0xf]
    %v1064 = vld [vmem:[#allocation5 + $0x2c4] sm:$0xf]
    %v1065 = vld [vmem:[#allocation5 + $0x2d0] sm:$0xf]
    %v1066 = vld [vmem:[#allocation5 + $0x2dc] sm:$0xf]
    %v1067 = vld [vmem:[#allocation5 + $0x2e8] sm:$0xf]
    %v1068 = vld [vmem:[#allocation5 + $0x2f4] sm:$0xf]
    %v1069 = vld [vmem:[#allocation5 + $0x300] sm:$0xf]
    %v1070 = vld [vmem:[#allocation5 + $0x30c] sm:$0xf]
    %v1071 = vld [vmem:[#allocation5 + $0x318] sm:$0xf]
    %v1072 = vld [vmem:[#allocation5 + $0x324] sm:$0xf]
    %v1073 = vld [vmem:[#allocation5 + $0x330] sm:$0xf]
    %v1074 = vld [vmem:[#allocation5 + $0x33c] sm:$0xf]
    %v1075 = vld [vmem:[#allocation5 + $0x348] sm:$0xf]
    %v1076 = vld [vmem:[#allocation5 + $0x354] sm:$0xf]
    %v1077 = vld [vmem:[#allocation5 + $0x360] sm:$0xf]
    %v1078 = vld [vmem:[#allocation5 + $0x36c] sm:$0xf]
    %v1079 = vld [vmem:[#allocation5 + $0x378] sm:$0xf]
    %v1080 = vld [vmem:[#allocation5 + $0x384] sm:$0xf]
    %v1081 = vld [vmem:[#allocation5 + $0x390] sm:$0xf]
    %v1082 = vld [vmem:[#allocation5 + $0x39c] sm:$0xf]
    %v1083 = vld [vmem:[#allocation5 + $0x3a8] sm:$0xf]
    %v1084 = vld [vmem:[#allocation5 + $0x3b4] sm:$0xf]
    %v1085 = vld [vmem:[#allocation5 + $0x3c0] sm:$0xf]
    %v1086 = vld [vmem:[#allocation5 + $0x3cc] sm:$0xf]
    %v1087 = vld [vmem:[#allocation5 + $0x3d8] sm:$0xf]
    %v1088 = vld [vmem:[#allocation5 + $0x3e4] sm:$0xf]
    %v1089 = vunpack.c.l.bf16 %v1057
    %v1090 = vunpack.c.l.bf16 %v1058
    %v1091 = vunpack.c.l.bf16 %v1059
    %v1092 = vunpack.c.l.bf16 %v1060
    %v1093 = vunpack.c.l.bf16 %v1061
    %v1094 = vunpack.c.l.bf16 %v1062
    %v1095 = vunpack.c.l.bf16 %v1063
    %v1096 = vunpack.c.l.bf16 %v1064
    %v1097 = vunpack.c.l.bf16 %v1065
    %v1098 = vunpack.c.l.bf16 %v1066
    %v1099 = vunpack.c.l.bf16 %v1067
    %v1100 = vunpack.c.l.bf16 %v1068
    %v1101 = vunpack.c.l.bf16 %v1069
    %v1102 = vunpack.c.l.bf16 %v1070
    %v1103 = vunpack.c.l.bf16 %v1071
    %v1104 = vunpack.c.l.bf16 %v1072
    %v1105 = vunpack.c.l.bf16 %v1073
    %v1106 = vunpack.c.l.bf16 %v1074
    %v1107 = vunpack.c.l.bf16 %v1075
    %v1108 = vunpack.c.l.bf16 %v1076
    %v1109 = vunpack.c.l.bf16 %v1077
    %v1110 = vunpack.c.l.bf16 %v1078
    %v1111 = vunpack.c.l.bf16 %v1079
    %v1112 = vunpack.c.l.bf16 %v1080
    %v1113 = vunpack.c.l.bf16 %v1081
    %v1114 = vunpack.c.l.bf16 %v1082
    %v1115 = vunpack.c.l.bf16 %v1083
    %v1116 = vunpack.c.l.bf16 %v1084
    %v1117 = vunpack.c.l.bf16 %v1085
    %v1118 = vunpack.c.l.bf16 %v1086
    %v1119 = vunpack.c.l.bf16 %v1087
    %v1120 = vunpack.c.l.bf16 %v1088
    %1121 = vmatprep.subr.mxu0 0.0
    %1122 = vmatpush1.msra.mxu0 %v1089
    %1123 = vmatprep.subr.mxu0 0.0
    %1124 = vmatpush1.msra.mxu0 %v1090
    %1125 = vmatprep.subr.mxu0 0.0
    %1126 = vmatpush1.msra.mxu0 %v1091
    %1127 = vmatprep.subr.mxu0 0.0
    %1128 = vmatpush1.msra.mxu0 %v1092
    %1129 = vmatprep.subr.mxu0 0.0
    %1130 = vmatpush1.msra.mxu0 %v1093
    %1131 = vmatprep.subr.mxu0 0.0
    %1132 = vmatpush1.msra.mxu0 %v1094
    %1133 = vmatprep.subr.mxu0 0.0
    %1134 = vmatpush1.msra.mxu0 %v1095
    %1135 = vmatprep.subr.mxu0 0.0
    %1136 = vmatpush1.msra.mxu0 %v1096
    %1137 = vmatprep.subr.mxu0 0.0
    %1138 = vmatpush1.msra.mxu0 %v1097
    %1139 = vmatprep.subr.mxu0 0.0
    %1140 = vmatpush1.msra.mxu0 %v1098
    %1141 = vmatprep.subr.mxu0 0.0
    %1142 = vmatpush1.msra.mxu0 %v1099
    %1143 = vmatprep.subr.mxu0 0.0
    %1144 = vmatpush1.msra.mxu0 %v1100
    %1145 = vmatprep.subr.mxu0 0.0
    %1146 = vmatpush1.msra.mxu0 %v1101
    %1147 = vmatprep.subr.mxu0 0.0
    %1148 = vmatpush1.msra.mxu0 %v1102
    %1149 = vmatprep.subr.mxu0 0.0
    %1150 = vmatpush1.msra.mxu0 %v1103
    %1151 = vmatprep.subr.mxu0 0.0
    %1152 = vmatpush1.msra.mxu0 %v1104
    %1153 = vmatprep.subr.mxu0 0.0
    %1154 = vmatpush1.msra.mxu0 %v1105
    %1155 = vmatprep.subr.mxu0 0.0
    %1156 = vmatpush1.msra.mxu0 %v1106
    %1157 = vmatprep.subr.mxu0 0.0
    %1158 = vmatpush1.msra.mxu0 %v1107
    %1159 = vmatprep.subr.mxu0 0.0
    %1160 = vmatpush1.msra.mxu0 %v1108
    %1161 = vmatprep.subr.mxu0 0.0
    %1162 = vmatpush1.msra.mxu0 %v1109
    %1163 = vmatprep.subr.mxu0 0.0
    %1164 = vmatpush1.msra.mxu0 %v1110
    %1165 = vmatprep.subr.mxu0 0.0
    %1166 = vmatpush1.msra.mxu0 %v1111
    %1167 = vmatprep.subr.mxu0 0.0
    %1168 = vmatpush1.msra.mxu0 %v1112
    %1169 = vmatprep.subr.mxu0 0.0
    %1170 = vmatpush1.msra.mxu0 %v1113
    %1171 = vmatprep.subr.mxu0 0.0
    %1172 = vmatpush1.msra.mxu0 %v1114
    %1173 = vmatprep.subr.mxu0 0.0
    %1174 = vmatpush1.msra.mxu0 %v1115
    %1175 = vmatprep.subr.mxu0 0.0
    %1176 = vmatpush1.msra.mxu0 %v1116
    %1177 = vmatprep.subr.mxu0 0.0
    %1178 = vmatpush1.msra.mxu0 %v1117
    %1179 = vmatprep.subr.mxu0 0.0
    %1180 = vmatpush1.msra.mxu0 %v1118
    %1181 = vmatprep.subr.mxu0 0.0
    %1182 = vmatpush1.msra.mxu0 %v1119
    %1183 = vmatprep.subr.mxu0 0.0
    %1184 = vmatpush1.msra.mxu0 %v1120
    %1185 = vmatprep.mubr.f32.mxu0 %v1054
    %1186 = vmatmul.mubr.f32.gmra.mrb[0].mxu0 %v1053
    %v1187 = vpop.f32.mrb[0].mxu0
    %v1188 = vadd.f32 0.0, %v1187
    %v1189 = vpop.f32.mrb[0].mxu0
    %1190 = vmatprep.mubr.f32.mxu0 %v1056
    %1191 = vmatmul.mubr.f32.gmra.mrb[0].mxu0 %v1055
    %v1192 = vpop.f32.mrb[0].mxu0
    %v1193 = vadd.f32 0.0, %v1192
    %v1194 = vpop.f32.mrb[0].mxu0
    %1195 = vdwg.mxu0
    %v1196 = vmul.f32 %v1188, %v1188
    %v1197 = vmul.f32 %v1193, %v1193
    %1198 = vmatprep.subr.mxu0 %v1196
    %1199 = vmatpush1.msra.mxu0 %v1188
    %1200 = vmatprep.subr.mxu0 %v1197
    %1201 = vmatpush1.msra.mxu0 %v1193
    %1202 = vmatprep.subr.mxu0 0.0
    %1203 = vmatpush1.msra.mxu0 0.0
    %1204 = vmatprep.subr.mxu0 0.0
    %1205 = vmatpush1.msra.mxu0 0.0
    %1206 = vmatprep.subr.mxu0 0.0
    %1207 = vmatpush1.msra.mxu0 0.0
    %1208 = vmatprep.subr.mxu0 0.0
    %1209 = vmatpush1.msra.mxu0 0.0
    %1210 = vmatprep.subr.mxu0 0.0
    %1211 = vmatpush1.msra.mxu0 0.0
    %1212 = vmatprep.subr.mxu0 0.0
    %1213 = vmatpush1.msra.mxu0 0.0
    %1214 = vmatprep.subr.mxu0 0.0
    %1215 = vmatpush1.msra.mxu0 0.0
    %1216 = vmatprep.subr.mxu0 0.0
    %1217 = vmatpush1.msra.mxu0 0.0
    %1218 = vmatprep.subr.mxu0 0.0
    %1219 = vmatpush1.msra.mxu0 0.0
    %1220 = vmatprep.subr.mxu0 0.0
    %1221 = vmatpush1.msra.mxu0 0.0
    %1222 = vmatprep.subr.mxu0 0.0
    %1223 = vmatpush1.msra.mxu0 0.0
    %1224 = vmatprep.subr.mxu0 0.0
    %1225 = vmatpush1.msra.mxu0 0.0
    %1226 = vmatprep.subr.mxu0 0.0
    %1227 = vmatpush1.msra.mxu0 0.0
    %1228 = vmatprep.subr.mxu0 0.0
    %1229 = vmatpush1.msra.mxu0 0.0
    %1230 = vmatprep.subr.mxu0 0.0
    %1231 = vmatpush1.msra.mxu0 0.0
    %1232 = vmatprep.subr.mxu0 0.0
    %1233 = vmatpush1.msra.mxu0 0.0
    %1234 = vmatprep.subr.mxu0 0.0
    %1235 = vmatpush1.msra.mxu0 0.0
    %1236 = vmatprep.subr.mxu0 0.0
    %1237 = vmatpush1.msra.mxu0 0.0
    %1238 = vmatprep.subr.mxu0 0.0
    %1239 = vmatpush1.msra.mxu0 0.0
    %1240 = vmatprep.subr.mxu0 0.0
    %1241 = vmatpush1.msra.mxu0 0.0
    %1242 = vmatprep.subr.mxu0 0.0
    %1243 = vmatpush1.msra.mxu0 0.0
    %1244 = vmatprep.subr.mxu0 0.0
    %1245 = vmatpush1.msra.mxu0 0.0
    %1246 = vmatprep.subr.mxu0 0.0
    %1247 = vmatpush1.msra.mxu0 0.0
    %1248 = vmatprep.subr.mxu0 0.0
    %1249 = vmatpush1.msra.mxu0 0.0
    %1250 = vmatprep.subr.mxu0 0.0
    %1251 = vmatpush1.msra.mxu0 0.0
    %1252 = vmatprep.subr.mxu0 0.0
    %1253 = vmatpush1.msra.mxu0 0.0
    %1254 = vmatprep.subr.mxu0 0.0
    %1255 = vmatpush1.msra.mxu0 0.0
    %1256 = vmatprep.subr.mxu0 0.0
    %1257 = vmatpush1.msra.mxu0 0.0
    %1258 = vmatprep.subr.mxu0 0.0
    %1259 = vmatpush1.msra.mxu0 0.0
    %1260 = vmatprep.subr.mxu0 0.0
    %1261 = vmatpush1.msra.mxu0 0.0
    %1262 = vmatprep.mubr.f32.mxu0 0.0
    %1263 = vmatmul.mubr.f32.gmra.mrb[0].mxu0 %v246
    %v1264 = vpop.f32.mrb[0].mxu0
    %v1265 = vadd.f32 0.0, %v1264
    %v1266 = vpop.f32.mrb[0].mxu0
    %v1267 = vadd.f32 0.0, %v1266
    %1268 = vdwg.mxu0
    %v1269 = vmul.f32 %v1265, 0.0625
    %v1270 = vmul.f32 %v1267, 0.0625
    %v1271 = vmul.f32 %v1269, %v1269
    %v1272 = vsub.f32 %v1270, %v1271
    %v1273 = vadd.f32 %v1272, 1e-05
    %v1274 = vrsqrt.pop %v1273
    %v1276 = vrot.slane %v1274, 4
    %v1278 = vmul.f32 %v54, %v1276
    %v1280 = vrot.slane %v1269, 4
    %v1282 = vmul.f32 %v1278, %v1280
    %v1284 = vrot.slane %v1282, 7
    %v1286 = vsub.f32 %v54, %v1284
    %v1287 = vlaneseq
    %v1288 = vshrl.u32 %v1287, 7
    %v1289 = vsub.s32 4, %v1288
    %v1290 = vrot.slane %v1278, %v1289
    %v1291 = vmul.f32 %v1290, %v1188
    %v1292 = vmul.f32 %v1290, %v1193
    %v1293 = vlaneseq
    %v1294 = vshrl.u32 %v1293, 7
    %v1295 = vsub.s32 5, %v1294
    %v1296 = vrot.slane %v1286, %v1295
    %v1297 = vadd.f32 %v1291, %v1296
    %v1298 = vadd.f32 %v1292, %v1296
    %v1299 = vmul.f32 %v1297, 0.01
    %v1300 = vmul.f32 %v1298, 0.01
    %v1301 = vmax.f32 %v1297, %v1299
    %v1302 = vmax.f32 %v1298, %v1300
    %v1303 = vld [vmem:[#allocation5 + $0x3f0] sm:$0xf]
    %v1304 = vld [vmem:[#allocation5 + $0x3fc] sm:$0xf]
    %v1305 = vld [vmem:[#allocation5 + $0x408] sm:$0xf]
    %v1306 = vld [vmem:[#allocation5 + $0x414] sm:$0xf]
    %v1307 = vld [vmem:[#allocation5 + $0x420] sm:$0xf]
    %v1308 = vld [vmem:[#allocation5 + $0x42c] sm:$0xf]
    %v1309 = vld [vmem:[#allocation5 + $0x438] sm:$0xf]
    %v1310 = vld [vmem:[#allocation5 + $0x444] sm:$0xf]
    %v1311 = vld [vmem:[#allocation5 + $0x450] sm:$0xf]
    %v1312 = vld [vmem:[#allocation5 + $0x45c] sm:$0xf]
    %v1313 = vld [vmem:[#allocation5 + $0x468] sm:$0xf]
    %v1314 = vld [vmem:[#allocation5 + $0x474] sm:$0xf]
    %v1315 = vld [vmem:[#allocation5 + $0x480] sm:$0xf]
    %v1316 = vld [vmem:[#allocation5 + $0x48c] sm:$0xf]
    %v1317 = vld [vmem:[#allocation5 + $0x498] sm:$0xf]
    %v1318 = vld [vmem:[#allocation5 + $0x4a4] sm:$0xf]
    %v1319 = vunpack.c.l.bf16 %v1303
    %v1320 = vunpack.c.l.bf16 %v1304
    %v1321 = vunpack.c.l.bf16 %v1305
    %v1322 = vunpack.c.l.bf16 %v1306
    %v1323 = vunpack.c.l.bf16 %v1307
    %v1324 = vunpack.c.l.bf16 %v1308
    %v1325 = vunpack.c.l.bf16 %v1309
    %v1326 = vunpack.c.l.bf16 %v1310
    %v1327 = vunpack.c.l.bf16 %v1311
    %v1328 = vunpack.c.l.bf16 %v1312
    %v1329 = vunpack.c.l.bf16 %v1313
    %v1330 = vunpack.c.l.bf16 %v1314
    %v1331 = vunpack.c.l.bf16 %v1315
    %v1332 = vunpack.c.l.bf16 %v1316
    %v1333 = vunpack.c.l.bf16 %v1317
    %v1334 = vunpack.c.l.bf16 %v1318
    %1335 = vmatprep.subr.mxu0 0.0
    %1336 = vmatpush1.msra.mxu0 %v1319
    %1337 = vmatprep.subr.mxu0 0.0
    %1338 = vmatpush1.msra.mxu0 %v1320
    %1339 = vmatprep.subr.mxu0 0.0
    %1340 = vmatpush1.msra.mxu0 %v1321
    %1341 = vmatprep.subr.mxu0 0.0
    %1342 = vmatpush1.msra.mxu0 %v1322
    %1343 = vmatprep.subr.mxu0 0.0
    %1344 = vmatpush1.msra.mxu0 %v1323
    %1345 = vmatprep.subr.mxu0 0.0
    %1346 = vmatpush1.msra.mxu0 %v1324
    %1347 = vmatprep.subr.mxu0 0.0
    %1348 = vmatpush1.msra.mxu0 %v1325
    %1349 = vmatprep.subr.mxu0 0.0
    %1350 = vmatpush1.msra.mxu0 %v1326
    %1351 = vmatprep.subr.mxu0 0.0
    %1352 = vmatpush1.msra.mxu0 %v1327
    %1353 = vmatprep.subr.mxu0 0.0
    %1354 = vmatpush1.msra.mxu0 %v1328
    %1355 = vmatprep.subr.mxu0 0.0
    %1356 = vmatpush1.msra.mxu0 %v1329
    %1357 = vmatprep.subr.mxu0 0.0
    %1358 = vmatpush1.msra.mxu0 %v1330
    %1359 = vmatprep.subr.mxu0 0.0
    %1360 = vmatpush1.msra.mxu0 %v1331
    %1361 = vmatprep.subr.mxu0 0.0
    %1362 = vmatpush1.msra.mxu0 %v1332
    %1363 = vmatprep.subr.mxu0 0.0
    %1364 = vmatpush1.msra.mxu0 %v1333
    %1365 = vmatprep.subr.mxu0 0.0
    %1366 = vmatpush1.msra.mxu0 %v1334
    %1367 = vmatprep.subr.mxu0 0.0
    %1368 = vmatpush1.msra.mxu0 0.0
    %1369 = vmatprep.subr.mxu0 0.0
    %1370 = vmatpush1.msra.mxu0 0.0
    %1371 = vmatprep.subr.mxu0 0.0
    %1372 = vmatpush1.msra.mxu0 0.0
    %1373 = vmatprep.subr.mxu0 0.0
    %1374 = vmatpush1.msra.mxu0 0.0
    %1375 = vmatprep.subr.mxu0 0.0
    %1376 = vmatpush1.msra.mxu0 0.0
    %1377 = vmatprep.subr.mxu0 0.0
    %1378 = vmatpush1.msra.mxu0 0.0
    %1379 = vmatprep.subr.mxu0 0.0
    %1380 = vmatpush1.msra.mxu0 0.0
    %1381 = vmatprep.subr.mxu0 0.0
    %1382 = vmatpush1.msra.mxu0 0.0
    %1383 = vmatprep.subr.mxu0 0.0
    %1384 = vmatpush1.msra.mxu0 0.0
    %1385 = vmatprep.subr.mxu0 0.0
    %1386 = vmatpush1.msra.mxu0 0.0
    %1387 = vmatprep.subr.mxu0 0.0
    %1388 = vmatpush1.msra.mxu0 0.0
    %1389 = vmatprep.subr.mxu0 0.0
    %1390 = vmatpush1.msra.mxu0 0.0
    %1391 = vmatprep.subr.mxu0 0.0
    %1392 = vmatpush1.msra.mxu0 0.0
    %1393 = vmatprep.subr.mxu0 0.0
    %1394 = vmatpush1.msra.mxu0 0.0
    %1395 = vmatprep.subr.mxu0 0.0
    %1396 = vmatpush1.msra.mxu0 0.0
    %1397 = vmatprep.subr.mxu0 0.0
    %1398 = vmatpush1.msra.mxu0 0.0
    %1399 = vmatprep.mubr.f32.mxu0 0.0
    %1400 = vmatmul.mubr.f32.gmra.mrb[0].mxu0 %v1301
    %v1401 = vpop.f32.mrb[0].mxu0
    %v1402 = vadd.f32 0.0, %v1401
    %v1403 = vpop.f32.mrb[0].mxu0
    %1404 = vmatprep.mubr.f32.mxu0 0.0
    %1405 = vmatmul.mubr.f32.gmra.mrb[0].mxu0 %v1302
    %v1406 = vpop.f32.mrb[0].mxu0
    %v1407 = vadd.f32 0.0, %v1406
    %v1408 = vpop.f32.mrb[0].mxu0
    %1409 = vdwg.mxu0
    %v1410 = vmul.f32 %v1402, %v1402
    %v1411 = vmul.f32 %v1407, %v1407
    %1412 = vmatprep.subr.mxu0 %v1410
    %1413 = vmatpush1.msra.mxu0 %v1402
    %1414 = vmatprep.subr.mxu0 %v1411
    %1415 = vmatpush1.msra.mxu0 %v1407
    %1416 = vmatprep.subr.mxu0 0.0
    %1417 = vmatpush1.msra.mxu0 0.0
    %1418 = vmatprep.subr.mxu0 0.0
    %1419 = vmatpush1.msra.mxu0 0.0
    %1420 = vmatprep.subr.mxu0 0.0
    %1421 = vmatpush1.msra.mxu0 0.0
    %1422 = vmatprep.subr.mxu0 0.0
    %1423 = vmatpush1.msra.mxu0 0.0
    %1424 = vmatprep.subr.mxu0 0.0
    %1425 = vmatpush1.msra.mxu0 0.0
    %1426 = vmatprep.subr.mxu0 0.0
    %1427 = vmatpush1.msra.mxu0 0.0
    %1428 = vmatprep.subr.mxu0 0.0
    %1429 = vmatpush1.msra.mxu0 0.0
    %1430 = vmatprep.subr.mxu0 0.0
    %1431 = vmatpush1.msra.mxu0 0.0
    %1432 = vmatprep.subr.mxu0 0.0
    %1433 = vmatpush1.msra.mxu0 0.0
    %1434 = vmatprep.subr.mxu0 0.0
    %1435 = vmatpush1.msra.mxu0 0.0
    %1436 = vmatprep.subr.mxu0 0.0
    %1437 = vmatpush1.msra.mxu0 0.0
    %1438 = vmatprep.subr.mxu0 0.0
    %1439 = vmatpush1.msra.mxu0 0.0
    %1440 = vmatprep.subr.mxu0 0.0
    %1441 = vmatpush1.msra.mxu0 0.0
    %1442 = vmatprep.subr.mxu0 0.0
    %1443 = vmatpush1.msra.mxu0 0.0
    %1444 = vmatprep.subr.mxu0 0.0
    %1445 = vmatpush1.msra.mxu0 0.0
    %1446 = vmatprep.subr.mxu0 0.0
    %1447 = vmatpush1.msra.mxu0 0.0
    %1448 = vmatprep.subr.mxu0 0.0
    %1449 = vmatpush1.msra.mxu0 0.0
    %1450 = vmatprep.subr.mxu0 0.0
    %1451 = vmatpush1.msra.mxu0 0.0
    %1452 = vmatprep.subr.mxu0 0.0
    %1453 = vmatpush1.msra.mxu0 0.0
    %1454 = vmatprep.subr.mxu0 0.0
    %1455 = vmatpush1.msra.mxu0 0.0
    %1456 = vmatprep.subr.mxu0 0.0
    %1457 = vmatpush1.msra.mxu0 0.0
    %1458 = vmatprep.subr.mxu0 0.0
    %1459 = vmatpush1.msra.mxu0 0.0
    %1460 = vmatprep.subr.mxu0 0.0
    %1461 = vmatpush1.msra.mxu0 0.0
    %1462 = vmatprep.subr.mxu0 0.0
    %1463 = vmatpush1.msra.mxu0 0.0
    %1464 = vmatprep.subr.mxu0 0.0
    %1465 = vmatpush1.msra.mxu0 0.0
    %1466 = vmatprep.subr.mxu0 0.0
    %1467 = vmatpush1.msra.mxu0 0.0
    %1468 = vmatprep.subr.mxu0 0.0
    %1469 = vmatpush1.msra.mxu0 0.0
    %1470 = vmatprep.subr.mxu0 0.0
    %1471 = vmatpush1.msra.mxu0 0.0
    %1472 = vmatprep.subr.mxu0 0.0
    %1473 = vmatpush1.msra.mxu0 0.0
    %1474 = vmatprep.subr.mxu0 0.0
    %1475 = vmatpush1.msra.mxu0 0.0
    %1476 = vmatprep.mubr.f32.mxu0 0.0
    %1477 = vmatmul.mubr.f32.gmra.mrb[0].mxu0 %v246
    %v1478 = vpop.f32.mrb[0].mxu0
    %v1479 = vadd.f32 0.0, %v1478
    %v1480 = vpop.f32.mrb[0].mxu0
    %v1481 = vadd.f32 0.0, %v1480
    %1482 = vdwg.mxu0
    %v1483 = vmul.f32 %v1479, 0.0625
    %v1484 = vmul.f32 %v1481, 0.0625
    %v1485 = vmul.f32 %v1483, %v1483
    %v1486 = vsub.f32 %v1484, %v1485
    %v1487 = vadd.f32 %v1486, 1e-05
    %v1488 = vrsqrt.pop %v1487
    %v1490 = vrot.slane %v1488, 2
    %v1492 = vmul.f32 %v54, %v1490
    %v1494 = vrot.slane %v1483, 2
    %v1496 = vmul.f32 %v1492, %v1494
    %v1498 = vrot.slane %v1496, 7
    %v1500 = vsub.f32 %v54, %v1498
    %v1501 = vlaneseq
    %v1502 = vshrl.u32 %v1501, 7
    %v1503 = vsub.s32 6, %v1502
    %v1504 = vrot.slane %v1492, %v1503
    %v1505 = vmul.f32 %v1504, %v1402
    %v1506 = vmul.f32 %v1504, %v1407
    %v1507 = vlaneseq
    %v1508 = vshrl.u32 %v1507, 7
    %v1509 = vsub.s32 7, %v1508
    %v1510 = vrot.slane %v1500, %v1509
    %v1511 = vadd.f32 %v1505, %v1510
    %v1512 = vadd.f32 %v1506, %v1510
    %v1513 = vmul.f32 %v1511, 0.01
    %v1514 = vmul.f32 %v1512, 0.01
    %v1515 = vmax.f32 %v1511, %v1513
    %v1516 = vmax.f32 %v1512, %v1514
    %1517 = vst [vmem:[#allocation8] sm:$0xff] %v1515
    %1518 = vst [vmem:[#allocation8 + $0x8] sm:$0xff] %v1516
    // Predicated region
    $region26: #{neural_net_forward.1} parent=1 // pred_check
      _
    $region27: #{neural_net_forward.1} parent=1 // pred_check_branch
      %1520 = sbr.rel (0) target = $region29
    $region28: #{neural_net_forward.1} parent=1 // pred_region
      %s1522 = ssub.s32 256, 256
      %1523 = vsyncadd [#allocation4], %s1522
      %s1524 = sshll.u32 [#allocation8], 4
      %s1525 = int_to_ptr.vmem [resolvable:$true] %s1524
      %1530 = dma.vmem_to_hbm [thread:$0]  %s1525, 256, %s3, [#allocation4], 128, 128, 8
    $region29: #{neural_net_forward.1} parent=1 // pred_fallthru
      _
    // Predicated region
    $region30: #{neural_net_forward.1} parent=1 // pred_check
      _
    $region31: #{neural_net_forward.1} parent=1 // pred_check_branch
      %1532 = sbr.rel (0) target = $region33
    $region32: #{neural_net_forward.1} parent=1 // pred_region
      %1533 = dma.done [#allocation4], 256
    $region33: #{neural_net_forward.1} parent=1 // pred_fallthru
      _
    %1534 = vsyncpa [#allocation3], 1
    %1535 = vsyncpa [#allocation6], 1
    %1536 = vsyncpa [#allocation4], 1

</llo_original>
